<compile_context>
chip_gen: v5e
topology: v5e:2x2
jax: 0.10.0
libtpu: 0.0.40
codegen_flags: <defaults>
</compile_context>

<pallas_src>
import functools

import jax
import jax.numpy as jnp
import numpy as np
from jax.experimental import pallas as pl
from jax.experimental.pallas import tpu as pltpu

LANE = 128


def rnn_zero_kernel(idx_ref, w_ref, b_ref, out_ref, h_scratch,
                    *, utt_len, n_batch, n_types, lane):
    N = n_batch
    T = n_types

    # ---- packed weights: every block is 128-lane aligned ----
    w_hh = w_ref[:, 0:3 * lane]            # [128, 384]  (r | z | n), zero padded
    w_out = w_ref[:, 3 * lane:4 * lane]    # [128, 128]  rows 0:E, cols 0:V1 valid
    emb = w_ref[:, 4 * lane:5 * lane]      # [128, 128]  rows 0:M, cols 0:E valid

    # ---- loop-invariant biases, broadcast ONCE (JAX does not CSE broadcasts) --
    B = b_ref[...]                                          # [8, 128]
    b_r = jnp.broadcast_to(B[0:1, :], (N, lane))            # b_ir + b_hr
    b_z = jnp.broadcast_to(B[1:2, :], (N, lane))            # b_iz + b_hz
    b_hn = jnp.broadcast_to(B[2:3, :], (N, lane))
    b_in = jnp.broadcast_to(B[3:4, :], (N, lane))
    b_out = jnp.broadcast_to(B[4:5, :], (utt_len * N, lane))

    # ---- fused embedding lookup + sum: multi-hot via iota compare, one matmul -
    idx_t = idx_ref[...]                                    # [T, N] int32 (offset indices)
    lane_ids = jax.lax.broadcasted_iota(jnp.int32, (T, N, lane), 2)
    multihot = jnp.sum((lane_ids == idx_t[:, :, None]).astype(jnp.float32),
                       axis=0)                              # [N, 128]
    h = jnp.dot(multihot, emb, preferred_element_type=jnp.float32)  # [N, 128]
    # TODO(synk): nn.Dropout on the embedding sum omitted (eval-mode identity).

    # ---- GRU recurrence, fully unrolled; only lane-aligned slices on the chain
    for t in range(utt_len):
        gates = jnp.dot(h, w_hh, preferred_element_type=jnp.float32)   # [N, 384]
        r = jax.nn.sigmoid(b_r + gates[:, 0:lane])
        z = jax.nn.sigmoid(b_z + gates[:, lane:2 * lane])
        n = jnp.tanh(b_in + r * (gates[:, 2 * lane:3 * lane] + b_hn))
        h = (1.0 - z) * n + z * h
        h_scratch[t * N:(t + 1) * N, :] = h                 # sublane-aligned store

    # ---- single batched output projection + one lane-dense store ----
    h_all = h_scratch[...]                                  # [utt_len*N, 128]
    out_ref[...] = (
        jnp.dot(h_all, w_out, preferred_element_type=jnp.float32) + b_out)


def pack_params(params, *, lane=LANE):
    """One-time packing of all float params into 2 lane-dense slabs."""
    emb_table = params["emb"]                 # [M, E]
    M, E = emb_table.shape
    V1 = params["b_out"].shape[-1]
    w_hh_t = params["w_hh_t"]                 # [E, 3E]  (r | z | n)
    assert E <= lane and 3 * E <= 3 * lane and M <= lane and V1 <= lane

    w_pack = jnp.zeros((lane, 5 * lane), jnp.float32)
    for g in range(3):                                        # r, z, n gate blocks
        w_pack = w_pack.at[:E, g * lane:g * lane + E].set(
            w_hh_t[:, g * E:(g + 1) * E])
    w_pack = w_pack.at[:E, 3 * lane:3 * lane + V1].set(params["w_out_t"])
    w_pack = w_pack.at[:M, 4 * lane:4 * lane + E].set(emb_table)

    b_ih, b_hh, b_out = params["b_ih"], params["b_hh"], params["b_out"]
    b_pack = jnp.zeros((8, lane), jnp.float32)
    b_pack = b_pack.at[0, :E].set(b_ih[0:E] + b_hh[0:E])          # r bias (folded)
    b_pack = b_pack.at[1, :E].set(b_ih[E:2 * E] + b_hh[E:2 * E])  # z bias (folded)
    b_pack = b_pack.at[2, :E].set(b_hh[2 * E:3 * E])              # b_hn
    b_pack = b_pack.at[3, :E].set(b_ih[2 * E:3 * E])              # b_in
    b_pack = b_pack.at[4, :V1].set(b_out)

    return {"w_pack": w_pack, "b_pack": b_pack,
            "E": E, "M": M, "V1": V1, "meanings_per_type": M // params["emb"].shape[0] * 0 + (M // (M // E if False else 1))}  # placeholder overwritten below


def pack_params_full(params, *, num_meaning_types, lane=LANE):
    packed = pack_params(params, lane=lane)
    M = params["emb"].shape[0]
    packed["meanings_per_type"] = M // num_meaning_types
    return packed


def rnn_zero_forward(meanings, packed, *, utt_len, lane=LANE):
    """meanings: [N, T] int32. Returns utts [utt_len, N, vocab_size+1] f32."""
    N, T = meanings.shape
    V1 = packed["V1"]
    mpt = packed["meanings_per_type"]

    # index offsets (same math as torch: (cumsum(ones) - 1) * meanings_per_type)
    offsets = (jnp.cumsum(jnp.ones((T,), jnp.int32)) - 1) * mpt
    idx_t = (meanings + offsets[None, :]).astype(jnp.int32).T     # [T, N]

    kernel = functools.partial(rnn_zero_kernel, utt_len=utt_len, n_batch=N,
                               n_types=T, lane=lane)

    flops = 2 * (N * lane * lane                     # embedding matmul
                 + utt_len * N * lane * 3 * lane     # gate matmuls
                 + utt_len * N * lane * lane)        # batched output projection
    bytes_accessed = 4 * (idx_t.size + packed["w_pack"].size
                          + packed["b_pack"].size + utt_len * N * lane)

    vmem = pl.BlockSpec(memory_space=pltpu.MemorySpace.VMEM)
    out_pad = pl.pallas_call(
        kernel,
        out_shape=jax.ShapeDtypeStruct((utt_len * N, lane), jnp.float32),
        in_specs=[vmem, vmem, vmem],
        out_specs=vmem,
        scratch_shapes=[pltpu.VMEM((utt_len * N, lane), jnp.float32)],
        compiler_params=pltpu.CompilerParams(vmem_limit_bytes=16 * 1024 * 1024),
        cost_estimate=pl.CostEstimate(
            flops=flops,
            transcendentals=utt_len * 3 * N * lane,
            bytes_accessed=bytes_accessed),
    )(idx_t, packed["w_pack"], packed["b_pack"])

    # lane-dense [utt_len*N, 128] -> [utt_len, N, V1]
    return out_pad.reshape(utt_len, N, lane)[:, :, :V1]


def rnn_zero_reference(meanings, params, *, utt_len):
    """Pure-JAX reference with identical math (for correctness check)."""
    N, T = meanings.shape
    emb_table = params["emb"]
    M, E = emb_table.shape
    meanings_per_type = M // T
    offsets = (jnp.cumsum(jnp.ones((T,), jnp.int32)) - 1) * meanings_per_type
    idx = meanings + offsets[None, :]
    h = jnp.sum(emb_table[idx], axis=1)               # [N, E]
    w_hh_t, b_ih, b_hh = params["w_hh_t"], params["b_ih"], params["b_hh"]
    w_out_t, b_out = params["w_out_t"], params["b_out"]
    outs = []
    for _ in range(utt_len):
        g = h @ w_hh_t + b_hh[None, :]
        r = jax.nn.sigmoid(b_ih[None, 0:E] + g[:, 0:E])
        z = jax.nn.sigmoid(b_ih[None, E:2 * E] + g[:, E:2 * E])
        n = jnp.tanh(b_ih[None, 2 * E:3 * E] + r * g[:, 2 * E:3 * E])
        h = (1.0 - z) * n + z * h
        outs.append(h @ w_out_t + b_out[None, :])
    return jnp.stack(outs, axis=0)


def init_params(key, *, embedding_size, vocab_size, num_meaning_types,
                meanings_per_type):
    E = embedding_size
    V1 = vocab_size + 1
    M = num_meaning_types * meanings_per_type
    ks = jax.random.split(key, 6)
    s = 0.1
    return {
        # nn.Embedding(M, E)
        "emb": s * jax.random.normal(ks[0], (M, E), jnp.float32),
        # nn.GRU weight_hh_l0 [3E, E] stored transposed -> [E, 3E]  (r|z|n)
        "w_hh_t": s * jax.random.normal(ks[1], (E, 3 * E), jnp.float32),
        # bias_ih_l0 / bias_hh_l0 [3E]
        "b_ih": s * jax.random.normal(ks[2], (3 * E,), jnp.float32),
        "b_hh": s * jax.random.normal(ks[3], (3 * E,), jnp.float32),
        # nn.Linear(E, V+1) weight [V+1, E] stored transposed -> [E, V+1]
        "w_out_t": s * jax.random.normal(ks[4], (E, V1), jnp.float32),
        "b_out": s * jax.random.normal(ks[5], (V1,), jnp.float32),
        # weight_ih_l0 exists in the torch module but the GRU input is all
        # zeros, so it never contributes to the forward pass (only bias_ih).
    }


if __name__ == "__main__":
    embedding_size = 32
    vocab_size = 10
    utt_len = 8
    num_meaning_types = 4
    meanings_per_type = 5
    N = 8

    key = jax.random.PRNGKey(0)
    kp, km = jax.random.split(key)
    params = init_params(
        kp,
        embedding_size=embedding_size,
        vocab_size=vocab_size,
        num_meaning_types=num_meaning_types,
        meanings_per_type=meanings_per_type,
    )
    meanings = jax.random.randint(
        km, (N, num_meaning_types), 0, meanings_per_type, dtype=jnp.int32)

    # one-time parameter packing (2 lane-dense slabs)
    packed = pack_params_full(params, num_meaning_types=num_meaning_types)

    utts = rnn_zero_forward(meanings, packed, utt_len=utt_len)
    utts = jax.block_until_ready(utts)

    ref = rnn_zero_reference(meanings, params, utt_len=utt_len)
    assert utts.shape == (utt_len, N, vocab_size + 1)
    assert np.allclose(np.asarray(utts), np.asarray(ref), rtol=1e-4, atol=1e-4)
    print("KERNEL_OK")
</pallas_src>

<mosaic_0001>
module attributes {stable_mosaic.version = 11 : i64} {
  func.func @rnn_zero_kernel(%arg0: memref<4x8xi32, #tpu.memory_space<vmem>>, %arg1: memref<128x640xf32, #tpu.memory_space<vmem>>, %arg2: memref<8x128xf32, #tpu.memory_space<vmem>>, %arg3: memref<64x128xf32, #tpu.memory_space<vmem>>, %arg4: memref<64x128xf32, #tpu.memory_space<vmem>>) attributes {dimension_semantics = [], scalar_prefetch = 0 : i64, scratch_operands = 1 : i64, tpu.core_type = #tpu.core_type<tc>} {
    %c0 = arith.constant 0 : index
    %c0_0 = arith.constant 0 : index
    %0 = vector.load %arg1[%c0, %c0_0] : memref<128x640xf32, #tpu.memory_space<vmem>>, vector<128x384xf32>
    %c0_1 = arith.constant 0 : index
    %c384 = arith.constant 384 : index
    %1 = vector.load %arg1[%c0_1, %c384] : memref<128x640xf32, #tpu.memory_space<vmem>>, vector<128x128xf32>
    %c0_2 = arith.constant 0 : index
    %c512 = arith.constant 512 : index
    %2 = vector.load %arg1[%c0_2, %c512] : memref<128x640xf32, #tpu.memory_space<vmem>>, vector<128x128xf32>
    %c0_3 = arith.constant 0 : index
    %c0_4 = arith.constant 0 : index
    %3 = vector.load %arg2[%c0_3, %c0_4] : memref<8x128xf32, #tpu.memory_space<vmem>>, vector<8x128xf32>
    %4 = vector.extract_strided_slice %3 {offsets = [0, 0], sizes = [1, 128], strides = [1, 1]} : vector<8x128xf32> to vector<1x128xf32>
    %5 = vector.shape_cast %4 : vector<1x128xf32> to vector<1x128xf32>
    %6 = vector.broadcast %5 : vector<1x128xf32> to vector<8x128xf32>
    %7 = vector.extract_strided_slice %3 {offsets = [1, 0], sizes = [1, 128], strides = [1, 1]} : vector<8x128xf32> to vector<1x128xf32>
    %8 = vector.shape_cast %7 : vector<1x128xf32> to vector<1x128xf32>
    %9 = vector.broadcast %8 : vector<1x128xf32> to vector<8x128xf32>
    %10 = vector.extract_strided_slice %3 {offsets = [2, 0], sizes = [1, 128], strides = [1, 1]} : vector<8x128xf32> to vector<1x128xf32>
    %11 = vector.shape_cast %10 : vector<1x128xf32> to vector<1x128xf32>
    %12 = vector.broadcast %11 : vector<1x128xf32> to vector<8x128xf32>
    %13 = vector.extract_strided_slice %3 {offsets = [3, 0], sizes = [1, 128], strides = [1, 1]} : vector<8x128xf32> to vector<1x128xf32>
    %14 = vector.shape_cast %13 : vector<1x128xf32> to vector<1x128xf32>
    %15 = vector.broadcast %14 : vector<1x128xf32> to vector<8x128xf32>
    %16 = vector.extract_strided_slice %3 {offsets = [4, 0], sizes = [1, 128], strides = [1, 1]} : vector<8x128xf32> to vector<1x128xf32>
    %17 = vector.shape_cast %16 : vector<1x128xf32> to vector<1x128xf32>
    %18 = vector.broadcast %17 : vector<1x128xf32> to vector<64x128xf32>
    %c0_5 = arith.constant 0 : index
    %c0_6 = arith.constant 0 : index
    %19 = vector.load %arg0[%c0_5, %c0_6] : memref<4x8xi32, #tpu.memory_space<vmem>>, vector<4x8xi32>
    %20 = tpu.iota {dimensions = array<i32: 2>} : vector<4x8x128xi32>
    %21 = vector.shape_cast %19 : vector<4x8xi32> to vector<4x8x1xi32>
    %22 = vector.broadcast %21 : vector<4x8x1xi32> to vector<4x8x128xi32>
    %23 = arith.cmpi eq, %20, %22 : vector<4x8x128xi32>
    %24 = arith.extui %23 : vector<4x8x128xi1> to vector<4x8x128xi32>
    %25 = arith.sitofp %24 : vector<4x8x128xi32> to vector<4x8x128xf32>
    %cst = arith.constant dense<0.000000e+00> : vector<8x128xf32>
    %26 = vector.multi_reduction <add>, %25, %cst [0] : vector<4x8x128xf32> to vector<8x128xf32>
    %cst_7 = arith.constant dense<0.000000e+00> : vector<8x128xf32>
    %27 = tpu.matmul %26, %2, %cst_7 {dimension_numbers = #tpu.dot_dimension_numbers<[1], [0], [0], [1], [0, 0, 1, 1], [], []>} : vector<8x128xf32>, vector<128x128xf32>, vector<8x128xf32> -> vector<8x128xf32>
    %cst_8 = arith.constant dense<0.000000e+00> : vector<8x384xf32>
    %28 = tpu.matmul %27, %0, %cst_8 {dimension_numbers = #tpu.dot_dimension_numbers<[1], [0], [0], [1], [0, 0, 1, 1], [], []>} : vector<8x128xf32>, vector<128x384xf32>, vector<8x384xf32> -> vector<8x384xf32>
    %29 = vector.extract_strided_slice %28 {offsets = [0, 0], sizes = [8, 128], strides = [1, 1]} : vector<8x384xf32> to vector<8x128xf32>
    %30 = arith.addf %6, %29 : vector<8x128xf32>
    %31 = arith.negf %30 : vector<8x128xf32>
    %32 = math.exp %31 : vector<8x128xf32>
    %cst_9 = arith.constant 1.000000e+00 : f32
    %33 = vector.broadcast %cst_9 : f32 to vector<8x128xf32>
    %34 = arith.addf %33, %32 : vector<8x128xf32>
    %35 = arith.divf %33, %34 : vector<8x128xf32>
    %36 = vector.extract_strided_slice %28 {offsets = [0, 128], sizes = [8, 128], strides = [1, 1]} : vector<8x384xf32> to vector<8x128xf32>
    %37 = arith.addf %9, %36 : vector<8x128xf32>
    %38 = arith.negf %37 : vector<8x128xf32>
    %39 = math.exp %38 : vector<8x128xf32>
    %cst_10 = arith.constant 1.000000e+00 : f32
    %40 = vector.broadcast %cst_10 : f32 to vector<8x128xf32>
    %41 = arith.addf %40, %39 : vector<8x128xf32>
    %42 = arith.divf %40, %41 : vector<8x128xf32>
    %43 = vector.extract_strided_slice %28 {offsets = [0, 256], sizes = [8, 128], strides = [1, 1]} : vector<8x384xf32> to vector<8x128xf32>
    %44 = arith.addf %43, %12 : vector<8x128xf32>
    %45 = arith.mulf %35, %44 : vector<8x128xf32>
    %46 = arith.addf %15, %45 : vector<8x128xf32>
    %47 = math.tanh %46 : vector<8x128xf32>
    %cst_11 = arith.constant 1.000000e+00 : f32
    %48 = vector.broadcast %cst_11 : f32 to vector<8x128xf32>
    %49 = arith.subf %48, %42 : vector<8x128xf32>
    %50 = arith.mulf %49, %47 : vector<8x128xf32>
    %51 = arith.mulf %42, %27 : vector<8x128xf32>
    %52 = arith.addf %50, %51 : vector<8x128xf32>
    %c0_12 = arith.constant 0 : index
    %c0_13 = arith.constant 0 : index
    %53 = vector.load %arg4[%c0_12, %c0_13] : memref<64x128xf32, #tpu.memory_space<vmem>>, vector<8x128xf32>
    tpu.vector_store %arg4[%c0_12, %c0_13], %52 {strides = array<i32>} : memref<64x128xf32, #tpu.memory_space<vmem>>, vector<8x128xf32>,
    %cst_14 = arith.constant dense<0.000000e+00> : vector<8x384xf32>
    %54 = tpu.matmul %52, %0, %cst_14 {dimension_numbers = #tpu.dot_dimension_numbers<[1], [0], [0], [1], [0, 0, 1, 1], [], []>} : vector<8x128xf32>, vector<128x384xf32>, vector<8x384xf32> -> vector<8x384xf32>
    %55 = vector.extract_strided_slice %54 {offsets = [0, 0], sizes = [8, 128], strides = [1, 1]} : vector<8x384xf32> to vector<8x128xf32>
    %56 = arith.addf %6, %55 : vector<8x128xf32>
    %57 = arith.negf %56 : vector<8x128xf32>
    %58 = math.exp %57 : vector<8x128xf32>
    %cst_15 = arith.constant 1.000000e+00 : f32
    %59 = vector.broadcast %cst_15 : f32 to vector<8x128xf32>
    %60 = arith.addf %59, %58 : vector<8x128xf32>
    %61 = arith.divf %59, %60 : vector<8x128xf32>
    %62 = vector.extract_strided_slice %54 {offsets = [0, 128], sizes = [8, 128], strides = [1, 1]} : vector<8x384xf32> to vector<8x128xf32>
    %63 = arith.addf %9, %62 : vector<8x128xf32>
    %64 = arith.negf %63 : vector<8x128xf32>
    %65 = math.exp %64 : vector<8x128xf32>
    %cst_16 = arith.constant 1.000000e+00 : f32
    %66 = vector.broadcast %cst_16 : f32 to vector<8x128xf32>
    %67 = arith.addf %66, %65 : vector<8x128xf32>
    %68 = arith.divf %66, %67 : vector<8x128xf32>
    %69 = vector.extract_strided_slice %54 {offsets = [0, 256], sizes = [8, 128], strides = [1, 1]} : vector<8x384xf32> to vector<8x128xf32>
    %70 = arith.addf %69, %12 : vector<8x128xf32>
    %71 = arith.mulf %61, %70 : vector<8x128xf32>
    %72 = arith.addf %15, %71 : vector<8x128xf32>
    %73 = math.tanh %72 : vector<8x128xf32>
    %cst_17 = arith.constant 1.000000e+00 : f32
    %74 = vector.broadcast %cst_17 : f32 to vector<8x128xf32>
    %75 = arith.subf %74, %68 : vector<8x128xf32>
    %76 = arith.mulf %75, %73 : vector<8x128xf32>
    %77 = arith.mulf %68, %52 : vector<8x128xf32>
    %78 = arith.addf %76, %77 : vector<8x128xf32>
    %c8 = arith.constant 8 : index
    %c0_18 = arith.constant 0 : index
    %79 = vector.load %arg4[%c8, %c0_18] : memref<64x128xf32, #tpu.memory_space<vmem>>, vector<8x128xf32>
    tpu.vector_store %arg4[%c8, %c0_18], %78 {strides = array<i32>} : memref<64x128xf32, #tpu.memory_space<vmem>>, vector<8x128xf32>,
    %cst_19 = arith.constant dense<0.000000e+00> : vector<8x384xf32>
    %80 = tpu.matmul %78, %0, %cst_19 {dimension_numbers = #tpu.dot_dimension_numbers<[1], [0], [0], [1], [0, 0, 1, 1], [], []>} : vector<8x128xf32>, vector<128x384xf32>, vector<8x384xf32> -> vector<8x384xf32>
    %81 = vector.extract_strided_slice %80 {offsets = [0, 0], sizes = [8, 128], strides = [1, 1]} : vector<8x384xf32> to vector<8x128xf32>
    %82 = arith.addf %6, %81 : vector<8x128xf32>
    %83 = arith.negf %82 : vector<8x128xf32>
    %84 = math.exp %83 : vector<8x128xf32>
    %cst_20 = arith.constant 1.000000e+00 : f32
    %85 = vector.broadcast %cst_20 : f32 to vector<8x128xf32>
    %86 = arith.addf %85, %84 : vector<8x128xf32>
    %87 = arith.divf %85, %86 : vector<8x128xf32>
    %88 = vector.extract_strided_slice %80 {offsets = [0, 128], sizes = [8, 128], strides = [1, 1]} : vector<8x384xf32> to vector<8x128xf32>
    %89 = arith.addf %9, %88 : vector<8x128xf32>
    %90 = arith.negf %89 : vector<8x128xf32>
    %91 = math.exp %90 : vector<8x128xf32>
    %cst_21 = arith.constant 1.000000e+00 : f32
    %92 = vector.broadcast %cst_21 : f32 to vector<8x128xf32>
    %93 = arith.addf %92, %91 : vector<8x128xf32>
    %94 = arith.divf %92, %93 : vector<8x128xf32>
    %95 = vector.extract_strided_slice %80 {offsets = [0, 256], sizes = [8, 128], strides = [1, 1]} : vector<8x384xf32> to vector<8x128xf32>
    %96 = arith.addf %95, %12 : vector<8x128xf32>
    %97 = arith.mulf %87, %96 : vector<8x128xf32>
    %98 = arith.addf %15, %97 : vector<8x128xf32>
    %99 = math.tanh %98 : vector<8x128xf32>
    %cst_22 = arith.constant 1.000000e+00 : f32
    %100 = vector.broadcast %cst_22 : f32 to vector<8x128xf32>
    %101 = arith.subf %100, %94 : vector<8x128xf32>
    %102 = arith.mulf %101, %99 : vector<8x128xf32>
    %103 = arith.mulf %94, %78 : vector<8x128xf32>
    %104 = arith.addf %102, %103 : vector<8x128xf32>
    %c16 = arith.constant 16 : index
    %c0_23 = arith.constant 0 : index
    %105 = vector.load %arg4[%c16, %c0_23] : memref<64x128xf32, #tpu.memory_space<vmem>>, vector<8x128xf32>
    tpu.vector_store %arg4[%c16, %c0_23], %104 {strides = array<i32>} : memref<64x128xf32, #tpu.memory_space<vmem>>, vector<8x128xf32>,
    %cst_24 = arith.constant dense<0.000000e+00> : vector<8x384xf32>
    %106 = tpu.matmul %104, %0, %cst_24 {dimension_numbers = #tpu.dot_dimension_numbers<[1], [0], [0], [1], [0, 0, 1, 1], [], []>} : vector<8x128xf32>, vector<128x384xf32>, vector<8x384xf32> -> vector<8x384xf32>
    %107 = vector.extract_strided_slice %106 {offsets = [0, 0], sizes = [8, 128], strides = [1, 1]} : vector<8x384xf32> to vector<8x128xf32>
    %108 = arith.addf %6, %107 : vector<8x128xf32>
    %109 = arith.negf %108 : vector<8x128xf32>
    %110 = math.exp %109 : vector<8x128xf32>
    %cst_25 = arith.constant 1.000000e+00 : f32
    %111 = vector.broadcast %cst_25 : f32 to vector<8x128xf32>
    %112 = arith.addf %111, %110 : vector<8x128xf32>
    %113 = arith.divf %111, %112 : vector<8x128xf32>
    %114 = vector.extract_strided_slice %106 {offsets = [0, 128], sizes = [8, 128], strides = [1, 1]} : vector<8x384xf32> to vector<8x128xf32>
    %115 = arith.addf %9, %114 : vector<8x128xf32>
    %116 = arith.negf %115 : vector<8x128xf32>
    %117 = math.exp %116 : vector<8x128xf32>
    %cst_26 = arith.constant 1.000000e+00 : f32
    %118 = vector.broadcast %cst_26 : f32 to vector<8x128xf32>
    %119 = arith.addf %118, %117 : vector<8x128xf32>
    %120 = arith.divf %118, %119 : vector<8x128xf32>
    %121 = vector.extract_strided_slice %106 {offsets = [0, 256], sizes = [8, 128], strides = [1, 1]} : vector<8x384xf32> to vector<8x128xf32>
    %122 = arith.addf %121, %12 : vector<8x128xf32>
    %123 = arith.mulf %113, %122 : vector<8x128xf32>
    %124 = arith.addf %15, %123 : vector<8x128xf32>
    %125 = math.tanh %124 : vector<8x128xf32>
    %cst_27 = arith.constant 1.000000e+00 : f32
    %126 = vector.broadcast %cst_27 : f32 to vector<8x128xf32>
    %127 = arith.subf %126, %120 : vector<8x128xf32>
    %128 = arith.mulf %127, %125 : vector<8x128xf32>
    %129 = arith.mulf %120, %104 : vector<8x128xf32>
    %130 = arith.addf %128, %129 : vector<8x128xf32>
    %c24 = arith.constant 24 : index
    %c0_28 = arith.constant 0 : index
    %131 = vector.load %arg4[%c24, %c0_28] : memref<64x128xf32, #tpu.memory_space<vmem>>, vector<8x128xf32>
    tpu.vector_store %arg4[%c24, %c0_28], %130 {strides = array<i32>} : memref<64x128xf32, #tpu.memory_space<vmem>>, vector<8x128xf32>,
    %cst_29 = arith.constant dense<0.000000e+00> : vector<8x384xf32>
    %132 = tpu.matmul %130, %0, %cst_29 {dimension_numbers = #tpu.dot_dimension_numbers<[1], [0], [0], [1], [0, 0, 1, 1], [], []>} : vector<8x128xf32>, vector<128x384xf32>, vector<8x384xf32> -> vector<8x384xf32>
    %133 = vector.extract_strided_slice %132 {offsets = [0, 0], sizes = [8, 128], strides = [1, 1]} : vector<8x384xf32> to vector<8x128xf32>
    %134 = arith.addf %6, %133 : vector<8x128xf32>
    %135 = arith.negf %134 : vector<8x128xf32>
    %136 = math.exp %135 : vector<8x128xf32>
    %cst_30 = arith.constant 1.000000e+00 : f32
    %137 = vector.broadcast %cst_30 : f32 to vector<8x128xf32>
    %138 = arith.addf %137, %136 : vector<8x128xf32>
    %139 = arith.divf %137, %138 : vector<8x128xf32>
    %140 = vector.extract_strided_slice %132 {offsets = [0, 128], sizes = [8, 128], strides = [1, 1]} : vector<8x384xf32> to vector<8x128xf32>
    %141 = arith.addf %9, %140 : vector<8x128xf32>
    %142 = arith.negf %141 : vector<8x128xf32>
    %143 = math.exp %142 : vector<8x128xf32>
    %cst_31 = arith.constant 1.000000e+00 : f32
    %144 = vector.broadcast %cst_31 : f32 to vector<8x128xf32>
    %145 = arith.addf %144, %143 : vector<8x128xf32>
    %146 = arith.divf %144, %145 : vector<8x128xf32>
    %147 = vector.extract_strided_slice %132 {offsets = [0, 256], sizes = [8, 128], strides = [1, 1]} : vector<8x384xf32> to vector<8x128xf32>
    %148 = arith.addf %147, %12 : vector<8x128xf32>
    %149 = arith.mulf %139, %148 : vector<8x128xf32>
    %150 = arith.addf %15, %149 : vector<8x128xf32>
    %151 = math.tanh %150 : vector<8x128xf32>
    %cst_32 = arith.constant 1.000000e+00 : f32
    %152 = vector.broadcast %cst_32 : f32 to vector<8x128xf32>
    %153 = arith.subf %152, %146 : vector<8x128xf32>
    %154 = arith.mulf %153, %151 : vector<8x128xf32>
    %155 = arith.mulf %146, %130 : vector<8x128xf32>
    %156 = arith.addf %154, %155 : vector<8x128xf32>
    %c32 = arith.constant 32 : index
    %c0_33 = arith.constant 0 : index
    %157 = vector.load %arg4[%c32, %c0_33] : memref<64x128xf32, #tpu.memory_space<vmem>>, vector<8x128xf32>
    tpu.vector_store %arg4[%c32, %c0_33], %156 {strides = array<i32>} : memref<64x128xf32, #tpu.memory_space<vmem>>, vector<8x128xf32>,
    %cst_34 = arith.constant dense<0.000000e+00> : vector<8x384xf32>
    %158 = tpu.matmul %156, %0, %cst_34 {dimension_numbers = #tpu.dot_dimension_numbers<[1], [0], [0], [1], [0, 0, 1, 1], [], []>} : vector<8x128xf32>, vector<128x384xf32>, vector<8x384xf32> -> vector<8x384xf32>
    %159 = vector.extract_strided_slice %158 {offsets = [0, 0], sizes = [8, 128], strides = [1, 1]} : vector<8x384xf32> to vector<8x128xf32>
    %160 = arith.addf %6, %159 : vector<8x128xf32>
    %161 = arith.negf %160 : vector<8x128xf32>
    %162 = math.exp %161 : vector<8x128xf32>
    %cst_35 = arith.constant 1.000000e+00 : f32
    %163 = vector.broadcast %cst_35 : f32 to vector<8x128xf32>
    %164 = arith.addf %163, %162 : vector<8x128xf32>
    %165 = arith.divf %163, %164 : vector<8x128xf32>
    %166 = vector.extract_strided_slice %158 {offsets = [0, 128], sizes = [8, 128], strides = [1, 1]} : vector<8x384xf32> to vector<8x128xf32>
    %167 = arith.addf %9, %166 : vector<8x128xf32>
    %168 = arith.negf %167 : vector<8x128xf32>
    %169 = math.exp %168 : vector<8x128xf32>
    %cst_36 = arith.constant 1.000000e+00 : f32
    %170 = vector.broadcast %cst_36 : f32 to vector<8x128xf32>
    %171 = arith.addf %170, %169 : vector<8x128xf32>
    %172 = arith.divf %170, %171 : vector<8x128xf32>
    %173 = vector.extract_strided_slice %158 {offsets = [0, 256], sizes = [8, 128], strides = [1, 1]} : vector<8x384xf32> to vector<8x128xf32>
    %174 = arith.addf %173, %12 : vector<8x128xf32>
    %175 = arith.mulf %165, %174 : vector<8x128xf32>
    %176 = arith.addf %15, %175 : vector<8x128xf32>
    %177 = math.tanh %176 : vector<8x128xf32>
    %cst_37 = arith.constant 1.000000e+00 : f32
    %178 = vector.broadcast %cst_37 : f32 to vector<8x128xf32>
    %179 = arith.subf %178, %172 : vector<8x128xf32>
    %180 = arith.mulf %179, %177 : vector<8x128xf32>
    %181 = arith.mulf %172, %156 : vector<8x128xf32>
    %182 = arith.addf %180, %181 : vector<8x128xf32>
    %c40 = arith.constant 40 : index
    %c0_38 = arith.constant 0 : index
    %183 = vector.load %arg4[%c40, %c0_38] : memref<64x128xf32, #tpu.memory_space<vmem>>, vector<8x128xf32>
    tpu.vector_store %arg4[%c40, %c0_38], %182 {strides = array<i32>} : memref<64x128xf32, #tpu.memory_space<vmem>>, vector<8x128xf32>,
    %cst_39 = arith.constant dense<0.000000e+00> : vector<8x384xf32>
    %184 = tpu.matmul %182, %0, %cst_39 {dimension_numbers = #tpu.dot_dimension_numbers<[1], [0], [0], [1], [0, 0, 1, 1], [], []>} : vector<8x128xf32>, vector<128x384xf32>, vector<8x384xf32> -> vector<8x384xf32>
    %185 = vector.extract_strided_slice %184 {offsets = [0, 0], sizes = [8, 128], strides = [1, 1]} : vector<8x384xf32> to vector<8x128xf32>
    %186 = arith.addf %6, %185 : vector<8x128xf32>
    %187 = arith.negf %186 : vector<8x128xf32>
    %188 = math.exp %187 : vector<8x128xf32>
    %cst_40 = arith.constant 1.000000e+00 : f32
    %189 = vector.broadcast %cst_40 : f32 to vector<8x128xf32>
    %190 = arith.addf %189, %188 : vector<8x128xf32>
    %191 = arith.divf %189, %190 : vector<8x128xf32>
    %192 = vector.extract_strided_slice %184 {offsets = [0, 128], sizes = [8, 128], strides = [1, 1]} : vector<8x384xf32> to vector<8x128xf32>
    %193 = arith.addf %9, %192 : vector<8x128xf32>
    %194 = arith.negf %193 : vector<8x128xf32>
    %195 = math.exp %194 : vector<8x128xf32>
    %cst_41 = arith.constant 1.000000e+00 : f32
    %196 = vector.broadcast %cst_41 : f32 to vector<8x128xf32>
    %197 = arith.addf %196, %195 : vector<8x128xf32>
    %198 = arith.divf %196, %197 : vector<8x128xf32>
    %199 = vector.extract_strided_slice %184 {offsets = [0, 256], sizes = [8, 128], strides = [1, 1]} : vector<8x384xf32> to vector<8x128xf32>
    %200 = arith.addf %199, %12 : vector<8x128xf32>
    %201 = arith.mulf %191, %200 : vector<8x128xf32>
    %202 = arith.addf %15, %201 : vector<8x128xf32>
    %203 = math.tanh %202 : vector<8x128xf32>
    %cst_42 = arith.constant 1.000000e+00 : f32
    %204 = vector.broadcast %cst_42 : f32 to vector<8x128xf32>
    %205 = arith.subf %204, %198 : vector<8x128xf32>
    %206 = arith.mulf %205, %203 : vector<8x128xf32>
    %207 = arith.mulf %198, %182 : vector<8x128xf32>
    %208 = arith.addf %206, %207 : vector<8x128xf32>
    %c48 = arith.constant 48 : index
    %c0_43 = arith.constant 0 : index
    %209 = vector.load %arg4[%c48, %c0_43] : memref<64x128xf32, #tpu.memory_space<vmem>>, vector<8x128xf32>
    tpu.vector_store %arg4[%c48, %c0_43], %208 {strides = array<i32>} : memref<64x128xf32, #tpu.memory_space<vmem>>, vector<8x128xf32>,
    %cst_44 = arith.constant dense<0.000000e+00> : vector<8x384xf32>
    %210 = tpu.matmul %208, %0, %cst_44 {dimension_numbers = #tpu.dot_dimension_numbers<[1], [0], [0], [1], [0, 0, 1, 1], [], []>} : vector<8x128xf32>, vector<128x384xf32>, vector<8x384xf32> -> vector<8x384xf32>
    %211 = vector.extract_strided_slice %210 {offsets = [0, 0], sizes = [8, 128], strides = [1, 1]} : vector<8x384xf32> to vector<8x128xf32>
    %212 = arith.addf %6, %211 : vector<8x128xf32>
    %213 = arith.negf %212 : vector<8x128xf32>
    %214 = math.exp %213 : vector<8x128xf32>
    %cst_45 = arith.constant 1.000000e+00 : f32
    %215 = vector.broadcast %cst_45 : f32 to vector<8x128xf32>
    %216 = arith.addf %215, %214 : vector<8x128xf32>
    %217 = arith.divf %215, %216 : vector<8x128xf32>
    %218 = vector.extract_strided_slice %210 {offsets = [0, 128], sizes = [8, 128], strides = [1, 1]} : vector<8x384xf32> to vector<8x128xf32>
    %219 = arith.addf %9, %218 : vector<8x128xf32>
    %220 = arith.negf %219 : vector<8x128xf32>
    %221 = math.exp %220 : vector<8x128xf32>
    %cst_46 = arith.constant 1.000000e+00 : f32
    %222 = vector.broadcast %cst_46 : f32 to vector<8x128xf32>
    %223 = arith.addf %222, %221 : vector<8x128xf32>
    %224 = arith.divf %222, %223 : vector<8x128xf32>
    %225 = vector.extract_strided_slice %210 {offsets = [0, 256], sizes = [8, 128], strides = [1, 1]} : vector<8x384xf32> to vector<8x128xf32>
    %226 = arith.addf %225, %12 : vector<8x128xf32>
    %227 = arith.mulf %217, %226 : vector<8x128xf32>
    %228 = arith.addf %15, %227 : vector<8x128xf32>
    %229 = math.tanh %228 : vector<8x128xf32>
    %cst_47 = arith.constant 1.000000e+00 : f32
    %230 = vector.broadcast %cst_47 : f32 to vector<8x128xf32>
    %231 = arith.subf %230, %224 : vector<8x128xf32>
    %232 = arith.mulf %231, %229 : vector<8x128xf32>
    %233 = arith.mulf %224, %208 : vector<8x128xf32>
    %234 = arith.addf %232, %233 : vector<8x128xf32>
    %c56 = arith.constant 56 : index
    %c0_48 = arith.constant 0 : index
    %235 = vector.load %arg4[%c56, %c0_48] : memref<64x128xf32, #tpu.memory_space<vmem>>, vector<8x128xf32>
    tpu.vector_store %arg4[%c56, %c0_48], %234 {strides = array<i32>} : memref<64x128xf32, #tpu.memory_space<vmem>>, vector<8x128xf32>,
    %c0_49 = arith.constant 0 : index
    %c0_50 = arith.constant 0 : index
    %236 = vector.load %arg4[%c0_49, %c0_50] : memref<64x128xf32, #tpu.memory_space<vmem>>, vector<64x128xf32>
    %cst_51 = arith.constant dense<0.000000e+00> : vector<64x128xf32>
    %237 = tpu.matmul %236, %1, %cst_51 {dimension_numbers = #tpu.dot_dimension_numbers<[1], [0], [0], [1], [0, 0, 1, 1], [], []>} : vector<64x128xf32>, vector<128x128xf32>, vector<64x128xf32> -> vector<64x128xf32>
    %238 = arith.addf %237, %18 : vector<64x128xf32>
    %c0_52 = arith.constant 0 : index
    %c0_53 = arith.constant 0 : index
    %239 = vector.load %arg3[%c0_52, %c0_53] : memref<64x128xf32, #tpu.memory_space<vmem>>, vector<64x128xf32>
    tpu.vector_store %arg3[%c0_52, %c0_53], %238 {strides = array<i32>} : memref<64x128xf32, #tpu.memory_space<vmem>>, vector<64x128xf32>,
    return
  }
}

</mosaic_0001>

<llo_original>
// kernel: tpu_custom_call.1
$region0: #{tpu_custom_call.1}
  #allocation0 [shape = 'u32[]', space=smem, size = 0x4, offset = 0x4, fixed_abs, tag = 'smem constant byte address 0x4 - core index']
  #allocation1 [shape = 'u32[72,128]{1,0:T(1,128)}', space=vmem, size = 0x9000, scoped, tag = 'internal scratch']
  #allocation2 [shape = 'f32[64,128]{1,0:T(8,128)}', space=vmem, size = 0x8000, scoped, tag = 'scratch operand']
  %s0 = inlined_call_operand.hbm [shape: s32[4,8], index: 0, kind: input, shape index: {}]
  %s1 = inlined_call_operand.hbm [shape: f32[128,640], index: 1, kind: input, shape index: {}]
  %s2 = inlined_call_operand.hbm [shape: f32[8,128], index: 2, kind: input, shape index: {}]
  %s3 = inlined_call_operand.hbm [shape: f32[64,128], index: 3, kind: output, shape index: {}]
  %s4 = sld [smem:[#allocation0]]
  $region34: #{tpu_custom_call.1} parent=0
    _
  %s6 = ssub.s32 1, %s4
  %s7 = scalar_select 0, %s6, %s4
  $region1: #{tpu_custom_call.1} parent=0
    #allocation3 [shape = 'u8[2048]{0}', space=vmem, size = 0x800, scoped, tag = 'input window, operand 0, single buffered']
    #allocation4 [shape = 's32[1]{0}', space=sflag, size = 0x4, scoped, tag = 'scoped memory for tpu_custom_call.1']
    #allocation5 [shape = 's32[1]{0}', space=sflag, size = 0x4, scoped, tag = 'scoped memory for tpu_custom_call.1']
    #allocation6 [shape = 'u8[327680]{0}', space=vmem, size = 0x50000, scoped, tag = 'input window, operand 1, single buffered']
    #allocation7 [shape = 's32[1]{0}', space=sflag, size = 0x4, scoped, tag = 'scoped memory for tpu_custom_call.1']
    #allocation8 [shape = 'u8[4096]{0}', space=vmem, size = 0x1000, scoped, tag = 'input window, operand 2, single buffered']
    #allocation9 [shape = 'u8[32768]{0}', space=vmem, size = 0x8000, scoped, tag = 'output window, operand 0, single buffered']
    %8 = vsyncpa [#allocation4], 0
    %9 = vsyncpa [#allocation7], 0
    %10 = vsyncpa [#allocation5], 0
    // Predicated region
    $region2: #{tpu_custom_call.1} parent=1 // pred_check
      _
    $region3: #{tpu_custom_call.1} parent=1 // pred_check_branch
      %12 = sbr.rel (0) target = $region5
    $region4: #{tpu_custom_call.1} parent=1 // pred_region
      %14 = vsyncadd [#allocation4], 0
      %s16 = sshll.u32 %s0, 4
      %s17 = int_to_ptr.hbm [resolvable:$true] %s16
      %s18 = sshll.u32 [#allocation3], 4
      %s19 = int_to_ptr.vmem [resolvable:$true] %s18
      %21 = dma.hbm_to_vmem [thread:$0]  %s17, 64, %s19, [#allocation4]
    $region5: #{tpu_custom_call.1} parent=1 // pred_fallthru
      _
    // Predicated region
    $region6: #{tpu_custom_call.1} parent=1 // pred_check
      _
    $region7: #{tpu_custom_call.1} parent=1 // pred_check_branch
      %23 = sbr.rel (0) target = $region9
    $region8: #{tpu_custom_call.1} parent=1 // pred_region
      %25 = vsyncadd [#allocation7], 0
      %s26 = sshll.u32 %s1, 4
      %s27 = int_to_ptr.hbm [resolvable:$true] %s26
      %s28 = sshll.u32 [#allocation6], 4
      %s29 = int_to_ptr.vmem [resolvable:$true] %s28
      %34 = dma.hbm_to_vmem [thread:$0]  %s27, 10240, %s29, [#allocation7], 640, 640, 40
    $region9: #{tpu_custom_call.1} parent=1 // pred_fallthru
      _
    // Predicated region
    $region10: #{tpu_custom_call.1} parent=1 // pred_check
      _
    $region11: #{tpu_custom_call.1} parent=1 // pred_check_branch
      %36 = sbr.rel (0) target = $region13
    $region12: #{tpu_custom_call.1} parent=1 // pred_region
      %38 = vsyncadd [#allocation7], 0
      %s40 = sshll.u32 %s2, 4
      %s41 = int_to_ptr.hbm [resolvable:$true] %s40
      %s42 = sshll.u32 [#allocation8], 4
      %s43 = int_to_ptr.vmem [resolvable:$true] %s42
      %45 = dma.hbm_to_vmem [thread:$0]  %s41, 128, %s43, [#allocation7]
    $region13: #{tpu_custom_call.1} parent=1 // pred_fallthru
      _
    // Predicated region
    $region14: #{tpu_custom_call.1} parent=1 // pred_check
      _
    $region15: #{tpu_custom_call.1} parent=1 // pred_check_branch
      %47 = sbr.rel (0) target = $region17
    $region16: #{tpu_custom_call.1} parent=1 // pred_region
      %49 = dma.done [#allocation4], 64
    $region17: #{tpu_custom_call.1} parent=1 // pred_fallthru
      _
    // Predicated region
    $region18: #{tpu_custom_call.1} parent=1 // pred_check
      _
    $region19: #{tpu_custom_call.1} parent=1 // pred_check_branch
      %51 = sbr.rel (0) target = $region21
    $region20: #{tpu_custom_call.1} parent=1 // pred_region
      %53 = dma.done [#allocation7], 10240
    $region21: #{tpu_custom_call.1} parent=1 // pred_fallthru
      _
    // Predicated region
    $region22: #{tpu_custom_call.1} parent=1 // pred_check
      _
    $region23: #{tpu_custom_call.1} parent=1 // pred_check_branch
      %55 = sbr.rel (0) target = $region25
    $region24: #{tpu_custom_call.1} parent=1 // pred_region
      %57 = dma.done [#allocation7], 128
    $region25: #{tpu_custom_call.1} parent=1 // pred_fallthru
      _
    %v58 = vld [vmem:[#allocation6] sm:$0xff]
    %v59 = vld [vmem:[#allocation6 + $0x8] sm:$0xff]
    %v60 = vld [vmem:[#allocation6 + $0x10] sm:$0xff]
    %v61 = vld [vmem:[#allocation6 + $0x28] sm:$0xff]
    %v62 = vld [vmem:[#allocation6 + $0x30] sm:$0xff]
    %v63 = vld [vmem:[#allocation6 + $0x38] sm:$0xff]
    %v64 = vld [vmem:[#allocation6 + $0x50] sm:$0xff]
    %v65 = vld [vmem:[#allocation6 + $0x58] sm:$0xff]
    %v66 = vld [vmem:[#allocation6 + $0x60] sm:$0xff]
    %v67 = vld [vmem:[#allocation6 + $0x78] sm:$0xff]
    %v68 = vld [vmem:[#allocation6 + $0x80] sm:$0xff]
    %v69 = vld [vmem:[#allocation6 + $0x88] sm:$0xff]
    %v70 = vld [vmem:[#allocation6 + $0xa0] sm:$0xff]
    %v71 = vld [vmem:[#allocation6 + $0xa8] sm:$0xff]
    %v72 = vld [vmem:[#allocation6 + $0xb0] sm:$0xff]
    %v73 = vld [vmem:[#allocation6 + $0xc8] sm:$0xff]
    %v74 = vld [vmem:[#allocation6 + $0xd0] sm:$0xff]
    %v75 = vld [vmem:[#allocation6 + $0xd8] sm:$0xff]
    %v76 = vld [vmem:[#allocation6 + $0xf0] sm:$0xff]
    %v77 = vld [vmem:[#allocation6 + $0xf8] sm:$0xff]
    %v78 = vld [vmem:[#allocation6 + $0x100] sm:$0xff]
    %v79 = vld [vmem:[#allocation6 + $0x118] sm:$0xff]
    %v80 = vld [vmem:[#allocation6 + $0x120] sm:$0xff]
    %v81 = vld [vmem:[#allocation6 + $0x128] sm:$0xff]
    %v82 = vld [vmem:[#allocation6 + $0x140] sm:$0xff]
    %v83 = vld [vmem:[#allocation6 + $0x148] sm:$0xff]
    %v84 = vld [vmem:[#allocation6 + $0x150] sm:$0xff]
    %v85 = vld [vmem:[#allocation6 + $0x168] sm:$0xff]
    %v86 = vld [vmem:[#allocation6 + $0x170] sm:$0xff]
    %v87 = vld [vmem:[#allocation6 + $0x178] sm:$0xff]
    %v88 = vld [vmem:[#allocation6 + $0x190] sm:$0xff]
    %v89 = vld [vmem:[#allocation6 + $0x198] sm:$0xff]
    %v90 = vld [vmem:[#allocation6 + $0x1a0] sm:$0xff]
    %v91 = vld [vmem:[#allocation6 + $0x1b8] sm:$0xff]
    %v92 = vld [vmem:[#allocation6 + $0x1c0] sm:$0xff]
    %v93 = vld [vmem:[#allocation6 + $0x1c8] sm:$0xff]
    %v94 = vld [vmem:[#allocation6 + $0x1e0] sm:$0xff]
    %v95 = vld [vmem:[#allocation6 + $0x1e8] sm:$0xff]
    %v96 = vld [vmem:[#allocation6 + $0x1f0] sm:$0xff]
    %v97 = vld [vmem:[#allocation6 + $0x208] sm:$0xff]
    %v98 = vld [vmem:[#allocation6 + $0x210] sm:$0xff]
    %v99 = vld [vmem:[#allocation6 + $0x218] sm:$0xff]
    %v100 = vld [vmem:[#allocation6 + $0x230] sm:$0xff]
    %v101 = vld [vmem:[#allocation6 + $0x238] sm:$0xff]
    %v102 = vld [vmem:[#allocation6 + $0x240] sm:$0xff]
    %v103 = vld [vmem:[#allocation6 + $0x258] sm:$0xff]
    %v104 = vld [vmem:[#allocation6 + $0x260] sm:$0xff]
    %v105 = vld [vmem:[#allocation6 + $0x268] sm:$0xff]
    %v106 = vld [vmem:[#allocation6 + $0x18] sm:$0xff]
    %v107 = vld [vmem:[#allocation6 + $0x40] sm:$0xff]
    %v108 = vld [vmem:[#allocation6 + $0x68] sm:$0xff]
    %v109 = vld [vmem:[#allocation6 + $0x90] sm:$0xff]
    %v110 = vld [vmem:[#allocation6 + $0xb8] sm:$0xff]
    %v111 = vld [vmem:[#allocation6 + $0xe0] sm:$0xff]
    %v112 = vld [vmem:[#allocation6 + $0x108] sm:$0xff]
    %v113 = vld [vmem:[#allocation6 + $0x130] sm:$0xff]
    %v114 = vld [vmem:[#allocation6 + $0x158] sm:$0xff]
    %v115 = vld [vmem:[#allocation6 + $0x180] sm:$0xff]
    %v116 = vld [vmem:[#allocation6 + $0x1a8] sm:$0xff]
    %v117 = vld [vmem:[#allocation6 + $0x1d0] sm:$0xff]
    %v118 = vld [vmem:[#allocation6 + $0x1f8] sm:$0xff]
    %v119 = vld [vmem:[#allocation6 + $0x220] sm:$0xff]
    %v120 = vld [vmem:[#allocation6 + $0x248] sm:$0xff]
    %v121 = vld [vmem:[#allocation6 + $0x270] sm:$0xff]
    %v122 = vld [vmem:[#allocation6 + $0x20] sm:$0xff]
    %v123 = vld [vmem:[#allocation6 + $0x48] sm:$0xff]
    %v124 = vld [vmem:[#allocation6 + $0x70] sm:$0xff]
    %v125 = vld [vmem:[#allocation6 + $0x98] sm:$0xff]
    %v126 = vld [vmem:[#allocation6 + $0xc0] sm:$0xff]
    %v127 = vld [vmem:[#allocation6 + $0xe8] sm:$0xff]
    %v128 = vld [vmem:[#allocation6 + $0x110] sm:$0xff]
    %v129 = vld [vmem:[#allocation6 + $0x138] sm:$0xff]
    %v130 = vld [vmem:[#allocation6 + $0x160] sm:$0xff]
    %v131 = vld [vmem:[#allocation6 + $0x188] sm:$0xff]
    %v132 = vld [vmem:[#allocation6 + $0x1b0] sm:$0xff]
    %v133 = vld [vmem:[#allocation6 + $0x1d8] sm:$0xff]
    %v134 = vld [vmem:[#allocation6 + $0x200] sm:$0xff]
    %v135 = vld [vmem:[#allocation6 + $0x228] sm:$0xff]
    %v136 = vld [vmem:[#allocation6 + $0x250] sm:$0xff]
    %v137 = vld [vmem:[#allocation6 + $0x278] sm:$0xff]
    %v138 = vld [vmem:[#allocation8] sm:$0xff]
    %v139 = vperm.slane %v138, 0
    %v140 = vperm.slane %v138, 1
    %v141 = vperm.slane %v138, 2
    %v142 = vperm.slane %v138, 3
    %v143 = vperm.slane %v138, 4
    %v144 = vld [vmem:[#allocation3] sm:$0xf]
    %v145 = vlaneseq
    %v146 = vand.u32 %v145, 127
    %v147 = vperm.slane %v144, 0
    %v148 = vlaneseq
    %v149 = vshrl.u32 %v148, 7
    %151 = vset.pattern.permute.xlu0 %v149
    %152 = vperm.xlu0 %151, %v147
    %v153 = vpop.permute.xlu0 %152
    %v154 = vperm.slane %v144, 1
    %v155 = vlaneseq
    %v156 = vshrl.u32 %v155, 7
    %158 = vset.pattern.permute.xlu0 %v156
    %159 = vperm.xlu0 %158, %v154
    %v160 = vpop.permute.xlu0 %159
    %v161 = vperm.slane %v144, 2
    %v162 = vlaneseq
    %v163 = vshrl.u32 %v162, 7
    %165 = vset.pattern.permute.xlu0 %v163
    %166 = vperm.xlu0 %165, %v161
    %v167 = vpop.permute.xlu0 %166
    %v168 = vperm.slane %v144, 3
    %v169 = vlaneseq
    %v170 = vshrl.u32 %v169, 7
    %172 = vset.pattern.permute.xlu0 %v170
    %173 = vperm.xlu0 %172, %v168
    %v174 = vpop.permute.xlu0 %173
    %vm175 = vcmp.eq.s32.totalorder %v146, %v153
    %vm176 = vcmp.eq.s32.totalorder %v146, %v160
    %vm177 = vcmp.eq.s32.totalorder %v146, %v167
    %vm178 = vcmp.eq.s32.totalorder %v146, %v174
    %v179 = vsel %vm175, 1, 0
    %v180 = vsel %vm176, 1, 0
    %v181 = vsel %vm177, 1, 0
    %v182 = vsel %vm178, 1, 0
    %v183 = vcvt.s32.f32 %v179
    %v184 = vcvt.s32.f32 %v180
    %v185 = vcvt.s32.f32 %v181
    %v186 = vcvt.s32.f32 %v182
    %v187 = vadd.f32 %v183, %v184
    %v188 = vadd.f32 %v187, %v185
    %v189 = vadd.f32 %v188, %v186
    %190 = vmatpush.msra.mxu0 %v137
    %191 = vmatpush.msra.mxu0 %v136
    %192 = vmatpush.msra.mxu0 %v135
    %193 = vmatpush.msra.mxu0 %v134
    %194 = vmatpush.msra.mxu0 %v133
    %195 = vmatpush.msra.mxu0 %v132
    %196 = vmatpush.msra.mxu0 %v131
    %197 = vmatpush.msra.mxu0 %v130
    %198 = vmatpush.msra.mxu0 %v129
    %199 = vmatpush.msra.mxu0 %v128
    %200 = vmatpush.msra.mxu0 %v127
    %201 = vmatpush.msra.mxu0 %v126
    %202 = vmatpush.msra.mxu0 %v125
    %203 = vmatpush.msra.mxu0 %v124
    %204 = vmatpush.msra.mxu0 %v123
    %205 = vmatpush.msra.mxu0 %v122
    %206 = vmatmul.f32.gmra.mxu0 %v189
    %v207 = vpop.f32.mrf.mxu0
    %v208 = vadd.f32 0.0, %v207
    %209 = vdwg.mxu0
    %210 = vmatpush.msra.mxu0 %v103
    %211 = vmatpush.msra.mxu0 %v100
    %212 = vmatpush.msra.mxu0 %v97
    %213 = vmatpush.msra.mxu0 %v94
    %214 = vmatpush.msra.mxu0 %v91
    %215 = vmatpush.msra.mxu0 %v88
    %216 = vmatpush.msra.mxu0 %v85
    %217 = vmatpush.msra.mxu0 %v82
    %218 = vmatpush.msra.mxu0 %v79
    %219 = vmatpush.msra.mxu0 %v76
    %220 = vmatpush.msra.mxu0 %v73
    %221 = vmatpush.msra.mxu0 %v70
    %222 = vmatpush.msra.mxu0 %v67
    %223 = vmatpush.msra.mxu0 %v64
    %224 = vmatpush.msra.mxu0 %v61
    %225 = vmatpush.msra.mxu0 %v58
    %226 = vmatmul.f32.gmra.mxu0 %v208
    %v227 = vpop.f32.mrf.mxu0
    %v228 = vadd.f32 0.0, %v227
    %229 = vdwg.mxu0
    %230 = vmatpush.msra.mxu0 %v104
    %231 = vmatpush.msra.mxu0 %v101
    %232 = vmatpush.msra.mxu0 %v98
    %233 = vmatpush.msra.mxu0 %v95
    %234 = vmatpush.msra.mxu0 %v92
    %235 = vmatpush.msra.mxu0 %v89
    %236 = vmatpush.msra.mxu0 %v86
    %237 = vmatpush.msra.mxu0 %v83
    %238 = vmatpush.msra.mxu0 %v80
    %239 = vmatpush.msra.mxu0 %v77
    %240 = vmatpush.msra.mxu0 %v74
    %241 = vmatpush.msra.mxu0 %v71
    %242 = vmatpush.msra.mxu0 %v68
    %243 = vmatpush.msra.mxu0 %v65
    %244 = vmatpush.msra.mxu0 %v62
    %245 = vmatpush.msra.mxu0 %v59
    %246 = vmatmul.f32.gmra.mxu0 %v208
    %v247 = vpop.f32.mrf.mxu0
    %v248 = vadd.f32 0.0, %v247
    %249 = vdwg.mxu0
    %250 = vmatpush.msra.mxu0 %v105
    %251 = vmatpush.msra.mxu0 %v102
    %252 = vmatpush.msra.mxu0 %v99
    %253 = vmatpush.msra.mxu0 %v96
    %254 = vmatpush.msra.mxu0 %v93
    %255 = vmatpush.msra.mxu0 %v90
    %256 = vmatpush.msra.mxu0 %v87
    %257 = vmatpush.msra.mxu0 %v84
    %258 = vmatpush.msra.mxu0 %v81
    %259 = vmatpush.msra.mxu0 %v78
    %260 = vmatpush.msra.mxu0 %v75
    %261 = vmatpush.msra.mxu0 %v72
    %262 = vmatpush.msra.mxu0 %v69
    %263 = vmatpush.msra.mxu0 %v66
    %264 = vmatpush.msra.mxu0 %v63
    %265 = vmatpush.msra.mxu0 %v60
    %266 = vmatmul.f32.gmra.mxu0 %v208
    %v267 = vpop.f32.mrf.mxu0
    %v268 = vadd.f32 0.0, %v267
    %269 = vdwg.mxu0
    %v270 = vadd.f32 %v139, %v228
    %v271 = vxor.u32 %v270, 2147483648
    %v272 = vmul.f32 %v271, 1.442695
    %v273 = vpow.pop %v272
    %v274 = vadd.f32 %v273, 1.0
    %v275 = vrcp.pop %v274
    %v276 = vmul.f32 %v274, %v275
    %v277 = vsub.f32 1.0, %v276
    %v278 = vmul.f32 %v275, %v277
    %v279 = vadd.f32 %v275, %v278
    %vm280 = vweird.f32 %v274
    %vm281 = vweird.f32 %v275
    %vm282 = vmor %vm280, %vm281
    %v283 = vsel %vm282, %v275, %v279
    %v284 = vand.u32 2147483647, %v274
    %vm285 = vcmp.eq.f32.partialorder %v284, 8.507059e+37
    %v286 = vand.u32 %v274, 2147483648
    %v287 = vor.u32 1.1754944e-38, %v286
    %v288 = vsel %vm285, %v287, %v283
    %v289 = vmul.f32 1.0, %v288
    %v290 = vadd.f32 %v140, %v248
    %v291 = vxor.u32 %v290, 2147483648
    %v292 = vmul.f32 %v291, 1.442695
    %v293 = vpow.pop %v292
    %v294 = vadd.f32 %v293, 1.0
    %v295 = vrcp.pop %v294
    %v296 = vmul.f32 %v294, %v295
    %v297 = vsub.f32 1.0, %v296
    %v298 = vmul.f32 %v295, %v297
    %v299 = vadd.f32 %v295, %v298
    %vm300 = vweird.f32 %v294
    %vm301 = vweird.f32 %v295
    %vm302 = vmor %vm300, %vm301
    %v303 = vsel %vm302, %v295, %v299
    %v304 = vand.u32 2147483647, %v294
    %vm305 = vcmp.eq.f32.partialorder %v304, 8.507059e+37
    %v306 = vand.u32 %v294, 2147483648
    %v307 = vor.u32 1.1754944e-38, %v306
    %v308 = vsel %vm305, %v307, %v303
    %v309 = vmul.f32 1.0, %v308
    %v310 = vadd.f32 %v268, %v141
    %v311 = vmul.f32 %v289, %v310
    %v312 = vadd.f32 %v142, %v311
    %v313 = vtanh.pop %v312
    %v314 = vsub.f32 1.0, %v309
    %v315 = vmul.f32 %v314, %v313
    %v316 = vmul.f32 %v309, %v208
    %v317 = vadd.f32 %v315, %v316
    %318 = vst [vmem:[#allocation2] sm:$0xff] %v317
    %319 = vmatpush.msra.mxu0 %v103
    %320 = vmatpush.msra.mxu0 %v100
    %321 = vmatpush.msra.mxu0 %v97
    %322 = vmatpush.msra.mxu0 %v94
    %323 = vmatpush.msra.mxu0 %v91
    %324 = vmatpush.msra.mxu0 %v88
    %325 = vmatpush.msra.mxu0 %v85
    %326 = vmatpush.msra.mxu0 %v82
    %327 = vmatpush.msra.mxu0 %v79
    %328 = vmatpush.msra.mxu0 %v76
    %329 = vmatpush.msra.mxu0 %v73
    %330 = vmatpush.msra.mxu0 %v70
    %331 = vmatpush.msra.mxu0 %v67
    %332 = vmatpush.msra.mxu0 %v64
    %333 = vmatpush.msra.mxu0 %v61
    %334 = vmatpush.msra.mxu0 %v58
    %335 = vmatmul.f32.gmra.mxu0 %v317
    %v336 = vpop.f32.mrf.mxu0
    %v337 = vadd.f32 0.0, %v336
    %338 = vdwg.mxu0
    %339 = vmatpush.msra.mxu0 %v104
    %340 = vmatpush.msra.mxu0 %v101
    %341 = vmatpush.msra.mxu0 %v98
    %342 = vmatpush.msra.mxu0 %v95
    %343 = vmatpush.msra.mxu0 %v92
    %344 = vmatpush.msra.mxu0 %v89
    %345 = vmatpush.msra.mxu0 %v86
    %346 = vmatpush.msra.mxu0 %v83
    %347 = vmatpush.msra.mxu0 %v80
    %348 = vmatpush.msra.mxu0 %v77
    %349 = vmatpush.msra.mxu0 %v74
    %350 = vmatpush.msra.mxu0 %v71
    %351 = vmatpush.msra.mxu0 %v68
    %352 = vmatpush.msra.mxu0 %v65
    %353 = vmatpush.msra.mxu0 %v62
    %354 = vmatpush.msra.mxu0 %v59
    %355 = vmatmul.f32.gmra.mxu0 %v317
    %v356 = vpop.f32.mrf.mxu0
    %v357 = vadd.f32 0.0, %v356
    %358 = vdwg.mxu0
    %359 = vmatpush.msra.mxu0 %v105
    %360 = vmatpush.msra.mxu0 %v102
    %361 = vmatpush.msra.mxu0 %v99
    %362 = vmatpush.msra.mxu0 %v96
    %363 = vmatpush.msra.mxu0 %v93
    %364 = vmatpush.msra.mxu0 %v90
    %365 = vmatpush.msra.mxu0 %v87
    %366 = vmatpush.msra.mxu0 %v84
    %367 = vmatpush.msra.mxu0 %v81
    %368 = vmatpush.msra.mxu0 %v78
    %369 = vmatpush.msra.mxu0 %v75
    %370 = vmatpush.msra.mxu0 %v72
    %371 = vmatpush.msra.mxu0 %v69
    %372 = vmatpush.msra.mxu0 %v66
    %373 = vmatpush.msra.mxu0 %v63
    %374 = vmatpush.msra.mxu0 %v60
    %375 = vmatmul.f32.gmra.mxu0 %v317
    %v376 = vpop.f32.mrf.mxu0
    %v377 = vadd.f32 0.0, %v376
    %378 = vdwg.mxu0
    %v379 = vadd.f32 %v139, %v337
    %v380 = vxor.u32 %v379, 2147483648
    %v381 = vmul.f32 %v380, 1.442695
    %v382 = vpow.pop %v381
    %v383 = vadd.f32 %v382, 1.0
    %v384 = vrcp.pop %v383
    %v385 = vmul.f32 %v383, %v384
    %v386 = vsub.f32 1.0, %v385
    %v387 = vmul.f32 %v384, %v386
    %v388 = vadd.f32 %v384, %v387
    %vm389 = vweird.f32 %v383
    %vm390 = vweird.f32 %v384
    %vm391 = vmor %vm389, %vm390
    %v392 = vsel %vm391, %v384, %v388
    %v393 = vand.u32 2147483647, %v383
    %vm394 = vcmp.eq.f32.partialorder %v393, 8.507059e+37
    %v395 = vand.u32 %v383, 2147483648
    %v396 = vor.u32 1.1754944e-38, %v395
    %v397 = vsel %vm394, %v396, %v392
    %v398 = vmul.f32 1.0, %v397
    %v399 = vadd.f32 %v140, %v357
    %v400 = vxor.u32 %v399, 2147483648
    %v401 = vmul.f32 %v400, 1.442695
    %v402 = vpow.pop %v401
    %v403 = vadd.f32 %v402, 1.0
    %v404 = vrcp.pop %v403
    %v405 = vmul.f32 %v403, %v404
    %v406 = vsub.f32 1.0, %v405
    %v407 = vmul.f32 %v404, %v406
    %v408 = vadd.f32 %v404, %v407
    %vm409 = vweird.f32 %v403
    %vm410 = vweird.f32 %v404
    %vm411 = vmor %vm409, %vm410
    %v412 = vsel %vm411, %v404, %v408
    %v413 = vand.u32 2147483647, %v403
    %vm414 = vcmp.eq.f32.partialorder %v413, 8.507059e+37
    %v415 = vand.u32 %v403, 2147483648
    %v416 = vor.u32 1.1754944e-38, %v415
    %v417 = vsel %vm414, %v416, %v412
    %v418 = vmul.f32 1.0, %v417
    %v419 = vadd.f32 %v377, %v141
    %v420 = vmul.f32 %v398, %v419
    %v421 = vadd.f32 %v142, %v420
    %v422 = vtanh.pop %v421
    %v423 = vsub.f32 1.0, %v418
    %v424 = vmul.f32 %v423, %v422
    %v425 = vmul.f32 %v418, %v317
    %v426 = vadd.f32 %v424, %v425
    %427 = vst [vmem:[#allocation2 + $0x8] sm:$0xff] %v426
    %428 = vmatpush.msra.mxu0 %v103
    %429 = vmatpush.msra.mxu0 %v100
    %430 = vmatpush.msra.mxu0 %v97
    %431 = vmatpush.msra.mxu0 %v94
    %432 = vmatpush.msra.mxu0 %v91
    %433 = vmatpush.msra.mxu0 %v88
    %434 = vmatpush.msra.mxu0 %v85
    %435 = vmatpush.msra.mxu0 %v82
    %436 = vmatpush.msra.mxu0 %v79
    %437 = vmatpush.msra.mxu0 %v76
    %438 = vmatpush.msra.mxu0 %v73
    %439 = vmatpush.msra.mxu0 %v70
    %440 = vmatpush.msra.mxu0 %v67
    %441 = vmatpush.msra.mxu0 %v64
    %442 = vmatpush.msra.mxu0 %v61
    %443 = vmatpush.msra.mxu0 %v58
    %444 = vmatmul.f32.gmra.mxu0 %v426
    %v445 = vpop.f32.mrf.mxu0
    %v446 = vadd.f32 0.0, %v445
    %447 = vdwg.mxu0
    %448 = vmatpush.msra.mxu0 %v104
    %449 = vmatpush.msra.mxu0 %v101
    %450 = vmatpush.msra.mxu0 %v98
    %451 = vmatpush.msra.mxu0 %v95
    %452 = vmatpush.msra.mxu0 %v92
    %453 = vmatpush.msra.mxu0 %v89
    %454 = vmatpush.msra.mxu0 %v86
    %455 = vmatpush.msra.mxu0 %v83
    %456 = vmatpush.msra.mxu0 %v80
    %457 = vmatpush.msra.mxu0 %v77
    %458 = vmatpush.msra.mxu0 %v74
    %459 = vmatpush.msra.mxu0 %v71
    %460 = vmatpush.msra.mxu0 %v68
    %461 = vmatpush.msra.mxu0 %v65
    %462 = vmatpush.msra.mxu0 %v62
    %463 = vmatpush.msra.mxu0 %v59
    %464 = vmatmul.f32.gmra.mxu0 %v426
    %v465 = vpop.f32.mrf.mxu0
    %v466 = vadd.f32 0.0, %v465
    %467 = vdwg.mxu0
    %468 = vmatpush.msra.mxu0 %v105
    %469 = vmatpush.msra.mxu0 %v102
    %470 = vmatpush.msra.mxu0 %v99
    %471 = vmatpush.msra.mxu0 %v96
    %472 = vmatpush.msra.mxu0 %v93
    %473 = vmatpush.msra.mxu0 %v90
    %474 = vmatpush.msra.mxu0 %v87
    %475 = vmatpush.msra.mxu0 %v84
    %476 = vmatpush.msra.mxu0 %v81
    %477 = vmatpush.msra.mxu0 %v78
    %478 = vmatpush.msra.mxu0 %v75
    %479 = vmatpush.msra.mxu0 %v72
    %480 = vmatpush.msra.mxu0 %v69
    %481 = vmatpush.msra.mxu0 %v66
    %482 = vmatpush.msra.mxu0 %v63
    %483 = vmatpush.msra.mxu0 %v60
    %484 = vmatmul.f32.gmra.mxu0 %v426
    %v485 = vpop.f32.mrf.mxu0
    %v486 = vadd.f32 0.0, %v485
    %487 = vdwg.mxu0
    %v488 = vadd.f32 %v139, %v446
    %v489 = vxor.u32 %v488, 2147483648
    %v490 = vmul.f32 %v489, 1.442695
    %v491 = vpow.pop %v490
    %v492 = vadd.f32 %v491, 1.0
    %v493 = vrcp.pop %v492
    %v494 = vmul.f32 %v492, %v493
    %v495 = vsub.f32 1.0, %v494
    %v496 = vmul.f32 %v493, %v495
    %v497 = vadd.f32 %v493, %v496
    %vm498 = vweird.f32 %v492
    %vm499 = vweird.f32 %v493
    %vm500 = vmor %vm498, %vm499
    %v501 = vsel %vm500, %v493, %v497
    %v502 = vand.u32 2147483647, %v492
    %vm503 = vcmp.eq.f32.partialorder %v502, 8.507059e+37
    %v504 = vand.u32 %v492, 2147483648
    %v505 = vor.u32 1.1754944e-38, %v504
    %v506 = vsel %vm503, %v505, %v501
    %v507 = vmul.f32 1.0, %v506
    %v508 = vadd.f32 %v140, %v466
    %v509 = vxor.u32 %v508, 2147483648
    %v510 = vmul.f32 %v509, 1.442695
    %v511 = vpow.pop %v510
    %v512 = vadd.f32 %v511, 1.0
    %v513 = vrcp.pop %v512
    %v514 = vmul.f32 %v512, %v513
    %v515 = vsub.f32 1.0, %v514
    %v516 = vmul.f32 %v513, %v515
    %v517 = vadd.f32 %v513, %v516
    %vm518 = vweird.f32 %v512
    %vm519 = vweird.f32 %v513
    %vm520 = vmor %vm518, %vm519
    %v521 = vsel %vm520, %v513, %v517
    %v522 = vand.u32 2147483647, %v512
    %vm523 = vcmp.eq.f32.partialorder %v522, 8.507059e+37
    %v524 = vand.u32 %v512, 2147483648
    %v525 = vor.u32 1.1754944e-38, %v524
    %v526 = vsel %vm523, %v525, %v521
    %v527 = vmul.f32 1.0, %v526
    %v528 = vadd.f32 %v486, %v141
    %v529 = vmul.f32 %v507, %v528
    %v530 = vadd.f32 %v142, %v529
    %v531 = vtanh.pop %v530
    %v532 = vsub.f32 1.0, %v527
    %v533 = vmul.f32 %v532, %v531
    %v534 = vmul.f32 %v527, %v426
    %v535 = vadd.f32 %v533, %v534
    %536 = vst [vmem:[#allocation2 + $0x10] sm:$0xff] %v535
    %537 = vmatpush.msra.mxu0 %v103
    %538 = vmatpush.msra.mxu0 %v100
    %539 = vmatpush.msra.mxu0 %v97
    %540 = vmatpush.msra.mxu0 %v94
    %541 = vmatpush.msra.mxu0 %v91
    %542 = vmatpush.msra.mxu0 %v88
    %543 = vmatpush.msra.mxu0 %v85
    %544 = vmatpush.msra.mxu0 %v82
    %545 = vmatpush.msra.mxu0 %v79
    %546 = vmatpush.msra.mxu0 %v76
    %547 = vmatpush.msra.mxu0 %v73
    %548 = vmatpush.msra.mxu0 %v70
    %549 = vmatpush.msra.mxu0 %v67
    %550 = vmatpush.msra.mxu0 %v64
    %551 = vmatpush.msra.mxu0 %v61
    %552 = vmatpush.msra.mxu0 %v58
    %553 = vmatmul.f32.gmra.mxu0 %v535
    %v554 = vpop.f32.mrf.mxu0
    %v555 = vadd.f32 0.0, %v554
    %556 = vdwg.mxu0
    %557 = vmatpush.msra.mxu0 %v104
    %558 = vmatpush.msra.mxu0 %v101
    %559 = vmatpush.msra.mxu0 %v98
    %560 = vmatpush.msra.mxu0 %v95
    %561 = vmatpush.msra.mxu0 %v92
    %562 = vmatpush.msra.mxu0 %v89
    %563 = vmatpush.msra.mxu0 %v86
    %564 = vmatpush.msra.mxu0 %v83
    %565 = vmatpush.msra.mxu0 %v80
    %566 = vmatpush.msra.mxu0 %v77
    %567 = vmatpush.msra.mxu0 %v74
    %568 = vmatpush.msra.mxu0 %v71
    %569 = vmatpush.msra.mxu0 %v68
    %570 = vmatpush.msra.mxu0 %v65
    %571 = vmatpush.msra.mxu0 %v62
    %572 = vmatpush.msra.mxu0 %v59
    %573 = vmatmul.f32.gmra.mxu0 %v535
    %v574 = vpop.f32.mrf.mxu0
    %v575 = vadd.f32 0.0, %v574
    %576 = vdwg.mxu0
    %577 = vmatpush.msra.mxu0 %v105
    %578 = vmatpush.msra.mxu0 %v102
    %579 = vmatpush.msra.mxu0 %v99
    %580 = vmatpush.msra.mxu0 %v96
    %581 = vmatpush.msra.mxu0 %v93
    %582 = vmatpush.msra.mxu0 %v90
    %583 = vmatpush.msra.mxu0 %v87
    %584 = vmatpush.msra.mxu0 %v84
    %585 = vmatpush.msra.mxu0 %v81
    %586 = vmatpush.msra.mxu0 %v78
    %587 = vmatpush.msra.mxu0 %v75
    %588 = vmatpush.msra.mxu0 %v72
    %589 = vmatpush.msra.mxu0 %v69
    %590 = vmatpush.msra.mxu0 %v66
    %591 = vmatpush.msra.mxu0 %v63
    %592 = vmatpush.msra.mxu0 %v60
    %593 = vmatmul.f32.gmra.mxu0 %v535
    %v594 = vpop.f32.mrf.mxu0
    %v595 = vadd.f32 0.0, %v594
    %596 = vdwg.mxu0
    %v597 = vadd.f32 %v139, %v555
    %v598 = vxor.u32 %v597, 2147483648
    %v599 = vmul.f32 %v598, 1.442695
    %v600 = vpow.pop %v599
    %v601 = vadd.f32 %v600, 1.0
    %v602 = vrcp.pop %v601
    %v603 = vmul.f32 %v601, %v602
    %v604 = vsub.f32 1.0, %v603
    %v605 = vmul.f32 %v602, %v604
    %v606 = vadd.f32 %v602, %v605
    %vm607 = vweird.f32 %v601
    %vm608 = vweird.f32 %v602
    %vm609 = vmor %vm607, %vm608
    %v610 = vsel %vm609, %v602, %v606
    %v611 = vand.u32 2147483647, %v601
    %vm612 = vcmp.eq.f32.partialorder %v611, 8.507059e+37
    %v613 = vand.u32 %v601, 2147483648
    %v614 = vor.u32 1.1754944e-38, %v613
    %v615 = vsel %vm612, %v614, %v610
    %v616 = vmul.f32 1.0, %v615
    %v617 = vadd.f32 %v140, %v575
    %v618 = vxor.u32 %v617, 2147483648
    %v619 = vmul.f32 %v618, 1.442695
    %v620 = vpow.pop %v619
    %v621 = vadd.f32 %v620, 1.0
    %v622 = vrcp.pop %v621
    %v623 = vmul.f32 %v621, %v622
    %v624 = vsub.f32 1.0, %v623
    %v625 = vmul.f32 %v622, %v624
    %v626 = vadd.f32 %v622, %v625
    %vm627 = vweird.f32 %v621
    %vm628 = vweird.f32 %v622
    %vm629 = vmor %vm627, %vm628
    %v630 = vsel %vm629, %v622, %v626
    %v631 = vand.u32 2147483647, %v621
    %vm632 = vcmp.eq.f32.partialorder %v631, 8.507059e+37
    %v633 = vand.u32 %v621, 2147483648
    %v634 = vor.u32 1.1754944e-38, %v633
    %v635 = vsel %vm632, %v634, %v630
    %v636 = vmul.f32 1.0, %v635
    %v637 = vadd.f32 %v595, %v141
    %v638 = vmul.f32 %v616, %v637
    %v639 = vadd.f32 %v142, %v638
    %v640 = vtanh.pop %v639
    %v641 = vsub.f32 1.0, %v636
    %v642 = vmul.f32 %v641, %v640
    %v643 = vmul.f32 %v636, %v535
    %v644 = vadd.f32 %v642, %v643
    %645 = vst [vmem:[#allocation2 + $0x18] sm:$0xff] %v644
    %646 = vmatpush.msra.mxu0 %v103
    %647 = vmatpush.msra.mxu0 %v100
    %648 = vmatpush.msra.mxu0 %v97
    %649 = vmatpush.msra.mxu0 %v94
    %650 = vmatpush.msra.mxu0 %v91
    %651 = vmatpush.msra.mxu0 %v88
    %652 = vmatpush.msra.mxu0 %v85
    %653 = vmatpush.msra.mxu0 %v82
    %654 = vmatpush.msra.mxu0 %v79
    %655 = vmatpush.msra.mxu0 %v76
    %656 = vmatpush.msra.mxu0 %v73
    %657 = vmatpush.msra.mxu0 %v70
    %658 = vmatpush.msra.mxu0 %v67
    %659 = vmatpush.msra.mxu0 %v64
    %660 = vmatpush.msra.mxu0 %v61
    %661 = vmatpush.msra.mxu0 %v58
    %662 = vmatmul.f32.gmra.mxu0 %v644
    %v663 = vpop.f32.mrf.mxu0
    %v664 = vadd.f32 0.0, %v663
    %665 = vdwg.mxu0
    %666 = vmatpush.msra.mxu0 %v104
    %667 = vmatpush.msra.mxu0 %v101
    %668 = vmatpush.msra.mxu0 %v98
    %669 = vmatpush.msra.mxu0 %v95
    %670 = vmatpush.msra.mxu0 %v92
    %671 = vmatpush.msra.mxu0 %v89
    %672 = vmatpush.msra.mxu0 %v86
    %673 = vmatpush.msra.mxu0 %v83
    %674 = vmatpush.msra.mxu0 %v80
    %675 = vmatpush.msra.mxu0 %v77
    %676 = vmatpush.msra.mxu0 %v74
    %677 = vmatpush.msra.mxu0 %v71
    %678 = vmatpush.msra.mxu0 %v68
    %679 = vmatpush.msra.mxu0 %v65
    %680 = vmatpush.msra.mxu0 %v62
    %681 = vmatpush.msra.mxu0 %v59
    %682 = vmatmul.f32.gmra.mxu0 %v644
    %v683 = vpop.f32.mrf.mxu0
    %v684 = vadd.f32 0.0, %v683
    %685 = vdwg.mxu0
    %686 = vmatpush.msra.mxu0 %v105
    %687 = vmatpush.msra.mxu0 %v102
    %688 = vmatpush.msra.mxu0 %v99
    %689 = vmatpush.msra.mxu0 %v96
    %690 = vmatpush.msra.mxu0 %v93
    %691 = vmatpush.msra.mxu0 %v90
    %692 = vmatpush.msra.mxu0 %v87
    %693 = vmatpush.msra.mxu0 %v84
    %694 = vmatpush.msra.mxu0 %v81
    %695 = vmatpush.msra.mxu0 %v78
    %696 = vmatpush.msra.mxu0 %v75
    %697 = vmatpush.msra.mxu0 %v72
    %698 = vmatpush.msra.mxu0 %v69
    %699 = vmatpush.msra.mxu0 %v66
    %700 = vmatpush.msra.mxu0 %v63
    %701 = vmatpush.msra.mxu0 %v60
    %702 = vmatmul.f32.gmra.mxu0 %v644
    %v703 = vpop.f32.mrf.mxu0
    %v704 = vadd.f32 0.0, %v703
    %705 = vdwg.mxu0
    %v706 = vadd.f32 %v139, %v664
    %v707 = vxor.u32 %v706, 2147483648
    %v708 = vmul.f32 %v707, 1.442695
    %v709 = vpow.pop %v708
    %v710 = vadd.f32 %v709, 1.0
    %v711 = vrcp.pop %v710
    %v712 = vmul.f32 %v710, %v711
    %v713 = vsub.f32 1.0, %v712
    %v714 = vmul.f32 %v711, %v713
    %v715 = vadd.f32 %v711, %v714
    %vm716 = vweird.f32 %v710
    %vm717 = vweird.f32 %v711
    %vm718 = vmor %vm716, %vm717
    %v719 = vsel %vm718, %v711, %v715
    %v720 = vand.u32 2147483647, %v710
    %vm721 = vcmp.eq.f32.partialorder %v720, 8.507059e+37
    %v722 = vand.u32 %v710, 2147483648
    %v723 = vor.u32 1.1754944e-38, %v722
    %v724 = vsel %vm721, %v723, %v719
    %v725 = vmul.f32 1.0, %v724
    %v726 = vadd.f32 %v140, %v684
    %v727 = vxor.u32 %v726, 2147483648
    %v728 = vmul.f32 %v727, 1.442695
    %v729 = vpow.pop %v728
    %v730 = vadd.f32 %v729, 1.0
    %v731 = vrcp.pop %v730
    %v732 = vmul.f32 %v730, %v731
    %v733 = vsub.f32 1.0, %v732
    %v734 = vmul.f32 %v731, %v733
    %v735 = vadd.f32 %v731, %v734
    %vm736 = vweird.f32 %v730
    %vm737 = vweird.f32 %v731
    %vm738 = vmor %vm736, %vm737
    %v739 = vsel %vm738, %v731, %v735
    %v740 = vand.u32 2147483647, %v730
    %vm741 = vcmp.eq.f32.partialorder %v740, 8.507059e+37
    %v742 = vand.u32 %v730, 2147483648
    %v743 = vor.u32 1.1754944e-38, %v742
    %v744 = vsel %vm741, %v743, %v739
    %v745 = vmul.f32 1.0, %v744
    %v746 = vadd.f32 %v704, %v141
    %v747 = vmul.f32 %v725, %v746
    %v748 = vadd.f32 %v142, %v747
    %v749 = vtanh.pop %v748
    %v750 = vsub.f32 1.0, %v745
    %v751 = vmul.f32 %v750, %v749
    %v752 = vmul.f32 %v745, %v644
    %v753 = vadd.f32 %v751, %v752
    %754 = vst [vmem:[#allocation2 + $0x20] sm:$0xff] %v753
    %755 = vmatpush.msra.mxu0 %v103
    %756 = vmatpush.msra.mxu0 %v100
    %757 = vmatpush.msra.mxu0 %v97
    %758 = vmatpush.msra.mxu0 %v94
    %759 = vmatpush.msra.mxu0 %v91
    %760 = vmatpush.msra.mxu0 %v88
    %761 = vmatpush.msra.mxu0 %v85
    %762 = vmatpush.msra.mxu0 %v82
    %763 = vmatpush.msra.mxu0 %v79
    %764 = vmatpush.msra.mxu0 %v76
    %765 = vmatpush.msra.mxu0 %v73
    %766 = vmatpush.msra.mxu0 %v70
    %767 = vmatpush.msra.mxu0 %v67
    %768 = vmatpush.msra.mxu0 %v64
    %769 = vmatpush.msra.mxu0 %v61
    %770 = vmatpush.msra.mxu0 %v58
    %771 = vmatmul.f32.gmra.mxu0 %v753
    %v772 = vpop.f32.mrf.mxu0
    %v773 = vadd.f32 0.0, %v772
    %774 = vdwg.mxu0
    %775 = vmatpush.msra.mxu0 %v104
    %776 = vmatpush.msra.mxu0 %v101
    %777 = vmatpush.msra.mxu0 %v98
    %778 = vmatpush.msra.mxu0 %v95
    %779 = vmatpush.msra.mxu0 %v92
    %780 = vmatpush.msra.mxu0 %v89
    %781 = vmatpush.msra.mxu0 %v86
    %782 = vmatpush.msra.mxu0 %v83
    %783 = vmatpush.msra.mxu0 %v80
    %784 = vmatpush.msra.mxu0 %v77
    %785 = vmatpush.msra.mxu0 %v74
    %786 = vmatpush.msra.mxu0 %v71
    %787 = vmatpush.msra.mxu0 %v68
    %788 = vmatpush.msra.mxu0 %v65
    %789 = vmatpush.msra.mxu0 %v62
    %790 = vmatpush.msra.mxu0 %v59
    %791 = vmatmul.f32.gmra.mxu0 %v753
    %v792 = vpop.f32.mrf.mxu0
    %v793 = vadd.f32 0.0, %v792
    %794 = vdwg.mxu0
    %795 = vmatpush.msra.mxu0 %v105
    %796 = vmatpush.msra.mxu0 %v102
    %797 = vmatpush.msra.mxu0 %v99
    %798 = vmatpush.msra.mxu0 %v96
    %799 = vmatpush.msra.mxu0 %v93
    %800 = vmatpush.msra.mxu0 %v90
    %801 = vmatpush.msra.mxu0 %v87
    %802 = vmatpush.msra.mxu0 %v84
    %803 = vmatpush.msra.mxu0 %v81
    %804 = vmatpush.msra.mxu0 %v78
    %805 = vmatpush.msra.mxu0 %v75
    %806 = vmatpush.msra.mxu0 %v72
    %807 = vmatpush.msra.mxu0 %v69
    %808 = vmatpush.msra.mxu0 %v66
    %809 = vmatpush.msra.mxu0 %v63
    %810 = vmatpush.msra.mxu0 %v60
    %811 = vmatmul.f32.gmra.mxu0 %v753
    %v812 = vpop.f32.mrf.mxu0
    %v813 = vadd.f32 0.0, %v812
    %814 = vdwg.mxu0
    %v815 = vadd.f32 %v139, %v773
    %v816 = vxor.u32 %v815, 2147483648
    %v817 = vmul.f32 %v816, 1.442695
    %v818 = vpow.pop %v817
    %v819 = vadd.f32 %v818, 1.0
    %v820 = vrcp.pop %v819
    %v821 = vmul.f32 %v819, %v820
    %v822 = vsub.f32 1.0, %v821
    %v823 = vmul.f32 %v820, %v822
    %v824 = vadd.f32 %v820, %v823
    %vm825 = vweird.f32 %v819
    %vm826 = vweird.f32 %v820
    %vm827 = vmor %vm825, %vm826
    %v828 = vsel %vm827, %v820, %v824
    %v829 = vand.u32 2147483647, %v819
    %vm830 = vcmp.eq.f32.partialorder %v829, 8.507059e+37
    %v831 = vand.u32 %v819, 2147483648
    %v832 = vor.u32 1.1754944e-38, %v831
    %v833 = vsel %vm830, %v832, %v828
    %v834 = vmul.f32 1.0, %v833
    %v835 = vadd.f32 %v140, %v793
    %v836 = vxor.u32 %v835, 2147483648
    %v837 = vmul.f32 %v836, 1.442695
    %v838 = vpow.pop %v837
    %v839 = vadd.f32 %v838, 1.0
    %v840 = vrcp.pop %v839
    %v841 = vmul.f32 %v839, %v840
    %v842 = vsub.f32 1.0, %v841
    %v843 = vmul.f32 %v840, %v842
    %v844 = vadd.f32 %v840, %v843
    %vm845 = vweird.f32 %v839
    %vm846 = vweird.f32 %v840
    %vm847 = vmor %vm845, %vm846
    %v848 = vsel %vm847, %v840, %v844
    %v849 = vand.u32 2147483647, %v839
    %vm850 = vcmp.eq.f32.partialorder %v849, 8.507059e+37
    %v851 = vand.u32 %v839, 2147483648
    %v852 = vor.u32 1.1754944e-38, %v851
    %v853 = vsel %vm850, %v852, %v848
    %v854 = vmul.f32 1.0, %v853
    %v855 = vadd.f32 %v813, %v141
    %v856 = vmul.f32 %v834, %v855
    %v857 = vadd.f32 %v142, %v856
    %v858 = vtanh.pop %v857
    %v859 = vsub.f32 1.0, %v854
    %v860 = vmul.f32 %v859, %v858
    %v861 = vmul.f32 %v854, %v753
    %v862 = vadd.f32 %v860, %v861
    %863 = vst [vmem:[#allocation2 + $0x28] sm:$0xff] %v862
    %864 = vmatpush.msra.mxu0 %v103
    %865 = vmatpush.msra.mxu0 %v100
    %866 = vmatpush.msra.mxu0 %v97
    %867 = vmatpush.msra.mxu0 %v94
    %868 = vmatpush.msra.mxu0 %v91
    %869 = vmatpush.msra.mxu0 %v88
    %870 = vmatpush.msra.mxu0 %v85
    %871 = vmatpush.msra.mxu0 %v82
    %872 = vmatpush.msra.mxu0 %v79
    %873 = vmatpush.msra.mxu0 %v76
    %874 = vmatpush.msra.mxu0 %v73
    %875 = vmatpush.msra.mxu0 %v70
    %876 = vmatpush.msra.mxu0 %v67
    %877 = vmatpush.msra.mxu0 %v64
    %878 = vmatpush.msra.mxu0 %v61
    %879 = vmatpush.msra.mxu0 %v58
    %880 = vmatmul.f32.gmra.mxu0 %v862
    %v881 = vpop.f32.mrf.mxu0
    %v882 = vadd.f32 0.0, %v881
    %883 = vdwg.mxu0
    %884 = vmatpush.msra.mxu0 %v104
    %885 = vmatpush.msra.mxu0 %v101
    %886 = vmatpush.msra.mxu0 %v98
    %887 = vmatpush.msra.mxu0 %v95
    %888 = vmatpush.msra.mxu0 %v92
    %889 = vmatpush.msra.mxu0 %v89
    %890 = vmatpush.msra.mxu0 %v86
    %891 = vmatpush.msra.mxu0 %v83
    %892 = vmatpush.msra.mxu0 %v80
    %893 = vmatpush.msra.mxu0 %v77
    %894 = vmatpush.msra.mxu0 %v74
    %895 = vmatpush.msra.mxu0 %v71
    %896 = vmatpush.msra.mxu0 %v68
    %897 = vmatpush.msra.mxu0 %v65
    %898 = vmatpush.msra.mxu0 %v62
    %899 = vmatpush.msra.mxu0 %v59
    %900 = vmatmul.f32.gmra.mxu0 %v862
    %v901 = vpop.f32.mrf.mxu0
    %v902 = vadd.f32 0.0, %v901
    %903 = vdwg.mxu0
    %904 = vmatpush.msra.mxu0 %v105
    %905 = vmatpush.msra.mxu0 %v102
    %906 = vmatpush.msra.mxu0 %v99
    %907 = vmatpush.msra.mxu0 %v96
    %908 = vmatpush.msra.mxu0 %v93
    %909 = vmatpush.msra.mxu0 %v90
    %910 = vmatpush.msra.mxu0 %v87
    %911 = vmatpush.msra.mxu0 %v84
    %912 = vmatpush.msra.mxu0 %v81
    %913 = vmatpush.msra.mxu0 %v78
    %914 = vmatpush.msra.mxu0 %v75
    %915 = vmatpush.msra.mxu0 %v72
    %916 = vmatpush.msra.mxu0 %v69
    %917 = vmatpush.msra.mxu0 %v66
    %918 = vmatpush.msra.mxu0 %v63
    %919 = vmatpush.msra.mxu0 %v60
    %920 = vmatmul.f32.gmra.mxu0 %v862
    %v921 = vpop.f32.mrf.mxu0
    %v922 = vadd.f32 0.0, %v921
    %923 = vdwg.mxu0
    %v924 = vadd.f32 %v139, %v882
    %v925 = vxor.u32 %v924, 2147483648
    %v926 = vmul.f32 %v925, 1.442695
    %v927 = vpow.pop %v926
    %v928 = vadd.f32 %v927, 1.0
    %v929 = vrcp.pop %v928
    %v930 = vmul.f32 %v928, %v929
    %v931 = vsub.f32 1.0, %v930
    %v932 = vmul.f32 %v929, %v931
    %v933 = vadd.f32 %v929, %v932
    %vm934 = vweird.f32 %v928
    %vm935 = vweird.f32 %v929
    %vm936 = vmor %vm934, %vm935
    %v937 = vsel %vm936, %v929, %v933
    %v938 = vand.u32 2147483647, %v928
    %vm939 = vcmp.eq.f32.partialorder %v938, 8.507059e+37
    %v940 = vand.u32 %v928, 2147483648
    %v941 = vor.u32 1.1754944e-38, %v940
    %v942 = vsel %vm939, %v941, %v937
    %v943 = vmul.f32 1.0, %v942
    %v944 = vadd.f32 %v140, %v902
    %v945 = vxor.u32 %v944, 2147483648
    %v946 = vmul.f32 %v945, 1.442695
    %v947 = vpow.pop %v946
    %v948 = vadd.f32 %v947, 1.0
    %v949 = vrcp.pop %v948
    %v950 = vmul.f32 %v948, %v949
    %v951 = vsub.f32 1.0, %v950
    %v952 = vmul.f32 %v949, %v951
    %v953 = vadd.f32 %v949, %v952
    %vm954 = vweird.f32 %v948
    %vm955 = vweird.f32 %v949
    %vm956 = vmor %vm954, %vm955
    %v957 = vsel %vm956, %v949, %v953
    %v958 = vand.u32 2147483647, %v948
    %vm959 = vcmp.eq.f32.partialorder %v958, 8.507059e+37
    %v960 = vand.u32 %v948, 2147483648
    %v961 = vor.u32 1.1754944e-38, %v960
    %v962 = vsel %vm959, %v961, %v957
    %v963 = vmul.f32 1.0, %v962
    %v964 = vadd.f32 %v922, %v141
    %v965 = vmul.f32 %v943, %v964
    %v966 = vadd.f32 %v142, %v965
    %v967 = vtanh.pop %v966
    %v968 = vsub.f32 1.0, %v963
    %v969 = vmul.f32 %v968, %v967
    %v970 = vmul.f32 %v963, %v862
    %v971 = vadd.f32 %v969, %v970
    %972 = vst [vmem:[#allocation2 + $0x30] sm:$0xff] %v971
    %973 = vmatpush.msra.mxu0 %v103
    %974 = vmatpush.msra.mxu0 %v100
    %975 = vmatpush.msra.mxu0 %v97
    %976 = vmatpush.msra.mxu0 %v94
    %977 = vmatpush.msra.mxu0 %v91
    %978 = vmatpush.msra.mxu0 %v88
    %979 = vmatpush.msra.mxu0 %v85
    %980 = vmatpush.msra.mxu0 %v82
    %981 = vmatpush.msra.mxu0 %v79
    %982 = vmatpush.msra.mxu0 %v76
    %983 = vmatpush.msra.mxu0 %v73
    %984 = vmatpush.msra.mxu0 %v70
    %985 = vmatpush.msra.mxu0 %v67
    %986 = vmatpush.msra.mxu0 %v64
    %987 = vmatpush.msra.mxu0 %v61
    %988 = vmatpush.msra.mxu0 %v58
    %989 = vmatmul.f32.gmra.mxu0 %v971
    %v990 = vpop.f32.mrf.mxu0
    %v991 = vadd.f32 0.0, %v990
    %992 = vdwg.mxu0
    %993 = vmatpush.msra.mxu0 %v104
    %994 = vmatpush.msra.mxu0 %v101
    %995 = vmatpush.msra.mxu0 %v98
    %996 = vmatpush.msra.mxu0 %v95
    %997 = vmatpush.msra.mxu0 %v92
    %998 = vmatpush.msra.mxu0 %v89
    %999 = vmatpush.msra.mxu0 %v86
    %1000 = vmatpush.msra.mxu0 %v83
    %1001 = vmatpush.msra.mxu0 %v80
    %1002 = vmatpush.msra.mxu0 %v77
    %1003 = vmatpush.msra.mxu0 %v74
    %1004 = vmatpush.msra.mxu0 %v71
    %1005 = vmatpush.msra.mxu0 %v68
    %1006 = vmatpush.msra.mxu0 %v65
    %1007 = vmatpush.msra.mxu0 %v62
    %1008 = vmatpush.msra.mxu0 %v59
    %1009 = vmatmul.f32.gmra.mxu0 %v971
    %v1010 = vpop.f32.mrf.mxu0
    %v1011 = vadd.f32 0.0, %v1010
    %1012 = vdwg.mxu0
    %1013 = vmatpush.msra.mxu0 %v105
    %1014 = vmatpush.msra.mxu0 %v102
    %1015 = vmatpush.msra.mxu0 %v99
    %1016 = vmatpush.msra.mxu0 %v96
    %1017 = vmatpush.msra.mxu0 %v93
    %1018 = vmatpush.msra.mxu0 %v90
    %1019 = vmatpush.msra.mxu0 %v87
    %1020 = vmatpush.msra.mxu0 %v84
    %1021 = vmatpush.msra.mxu0 %v81
    %1022 = vmatpush.msra.mxu0 %v78
    %1023 = vmatpush.msra.mxu0 %v75
    %1024 = vmatpush.msra.mxu0 %v72
    %1025 = vmatpush.msra.mxu0 %v69
    %1026 = vmatpush.msra.mxu0 %v66
    %1027 = vmatpush.msra.mxu0 %v63
    %1028 = vmatpush.msra.mxu0 %v60
    %1029 = vmatmul.f32.gmra.mxu0 %v971
    %v1030 = vpop.f32.mrf.mxu0
    %v1031 = vadd.f32 0.0, %v1030
    %1032 = vdwg.mxu0
    %v1033 = vadd.f32 %v139, %v991
    %v1034 = vxor.u32 %v1033, 2147483648
    %v1035 = vmul.f32 %v1034, 1.442695
    %v1036 = vpow.pop %v1035
    %v1037 = vadd.f32 %v1036, 1.0
    %v1038 = vrcp.pop %v1037
    %v1039 = vmul.f32 %v1037, %v1038
    %v1040 = vsub.f32 1.0, %v1039
    %v1041 = vmul.f32 %v1038, %v1040
    %v1042 = vadd.f32 %v1038, %v1041
    %vm1043 = vweird.f32 %v1037
    %vm1044 = vweird.f32 %v1038
    %vm1045 = vmor %vm1043, %vm1044
    %v1046 = vsel %vm1045, %v1038, %v1042
    %v1047 = vand.u32 2147483647, %v1037
    %vm1048 = vcmp.eq.f32.partialorder %v1047, 8.507059e+37
    %v1049 = vand.u32 %v1037, 2147483648
    %v1050 = vor.u32 1.1754944e-38, %v1049
    %v1051 = vsel %vm1048, %v1050, %v1046
    %v1052 = vmul.f32 1.0, %v1051
    %v1053 = vadd.f32 %v140, %v1011
    %v1054 = vxor.u32 %v1053, 2147483648
    %v1055 = vmul.f32 %v1054, 1.442695
    %v1056 = vpow.pop %v1055
    %v1057 = vadd.f32 %v1056, 1.0
    %v1058 = vrcp.pop %v1057
    %v1059 = vmul.f32 %v1057, %v1058
    %v1060 = vsub.f32 1.0, %v1059
    %v1061 = vmul.f32 %v1058, %v1060
    %v1062 = vadd.f32 %v1058, %v1061
    %vm1063 = vweird.f32 %v1057
    %vm1064 = vweird.f32 %v1058
    %vm1065 = vmor %vm1063, %vm1064
    %v1066 = vsel %vm1065, %v1058, %v1062
    %v1067 = vand.u32 2147483647, %v1057
    %vm1068 = vcmp.eq.f32.partialorder %v1067, 8.507059e+37
    %v1069 = vand.u32 %v1057, 2147483648
    %v1070 = vor.u32 1.1754944e-38, %v1069
    %v1071 = vsel %vm1068, %v1070, %v1066
    %v1072 = vmul.f32 1.0, %v1071
    %v1073 = vadd.f32 %v1031, %v141
    %v1074 = vmul.f32 %v1052, %v1073
    %v1075 = vadd.f32 %v142, %v1074
    %v1076 = vtanh.pop %v1075
    %v1077 = vsub.f32 1.0, %v1072
    %v1078 = vmul.f32 %v1077, %v1076
    %v1079 = vmul.f32 %v1072, %v971
    %v1080 = vadd.f32 %v1078, %v1079
    %1081 = vst [vmem:[#allocation2 + $0x38] sm:$0xff] %v1080
    %v1082 = vld [vmem:[#allocation2] sm:$0xff]
    %v1083 = vld [vmem:[#allocation2 + $0x8] sm:$0xff]
    %v1084 = vld [vmem:[#allocation2 + $0x10] sm:$0xff]
    %v1085 = vld [vmem:[#allocation2 + $0x18] sm:$0xff]
    %v1086 = vld [vmem:[#allocation2 + $0x20] sm:$0xff]
    %v1087 = vld [vmem:[#allocation2 + $0x28] sm:$0xff]
    %v1088 = vld [vmem:[#allocation2 + $0x30] sm:$0xff]
    %v1089 = vld [vmem:[#allocation2 + $0x38] sm:$0xff]
    %1090 = vmatpush.msra.mxu0 %v121
    %1091 = vmatpush.msra.mxu0 %v120
    %1092 = vmatpush.msra.mxu0 %v119
    %1093 = vmatpush.msra.mxu0 %v118
    %1094 = vmatpush.msra.mxu0 %v117
    %1095 = vmatpush.msra.mxu0 %v116
    %1096 = vmatpush.msra.mxu0 %v115
    %1097 = vmatpush.msra.mxu0 %v114
    %1098 = vmatpush.msra.mxu0 %v113
    %1099 = vmatpush.msra.mxu0 %v112
    %1100 = vmatpush.msra.mxu0 %v111
    %1101 = vmatpush.msra.mxu0 %v110
    %1102 = vmatpush.msra.mxu0 %v109
    %1103 = vmatpush.msra.mxu0 %v108
    %1104 = vmatpush.msra.mxu0 %v107
    %1105 = vmatpush.msra.mxu0 %v106
    %1106 = vmatmul.f32.gmra.mxu0 %v1082
    %v1107 = vpop.f32.mrf.mxu0
    %v1108 = vadd.f32 %v143, %v1107
    %1109 = vmatmul.f32.gmra.mxu0 %v1083
    %v1110 = vpop.f32.mrf.mxu0
    %v1111 = vadd.f32 %v143, %v1110
    %1112 = vmatmul.f32.gmra.mxu0 %v1084
    %v1113 = vpop.f32.mrf.mxu0
    %v1114 = vadd.f32 %v143, %v1113
    %1115 = vmatmul.f32.gmra.mxu0 %v1085
    %v1116 = vpop.f32.mrf.mxu0
    %v1117 = vadd.f32 %v143, %v1116
    %1118 = vmatmul.f32.gmra.mxu0 %v1086
    %v1119 = vpop.f32.mrf.mxu0
    %v1120 = vadd.f32 %v143, %v1119
    %1121 = vmatmul.f32.gmra.mxu0 %v1087
    %v1122 = vpop.f32.mrf.mxu0
    %v1123 = vadd.f32 %v143, %v1122
    %1124 = vmatmul.f32.gmra.mxu0 %v1088
    %v1125 = vpop.f32.mrf.mxu0
    %v1126 = vadd.f32 %v143, %v1125
    %1127 = vmatmul.f32.gmra.mxu0 %v1089
    %v1128 = vpop.f32.mrf.mxu0
    %v1129 = vadd.f32 %v143, %v1128
    %1130 = vdwg.mxu0
    %1131 = vst [vmem:[#allocation9] sm:$0xff] %v1108
    %1132 = vst [vmem:[#allocation9 + $0x8] sm:$0xff] %v1111
    %1133 = vst [vmem:[#allocation9 + $0x10] sm:$0xff] %v1114
    %1134 = vst [vmem:[#allocation9 + $0x18] sm:$0xff] %v1117
    %1135 = vst [vmem:[#allocation9 + $0x20] sm:$0xff] %v1120
    %1136 = vst [vmem:[#allocation9 + $0x28] sm:$0xff] %v1123
    %1137 = vst [vmem:[#allocation9 + $0x30] sm:$0xff] %v1126
    %1138 = vst [vmem:[#allocation9 + $0x38] sm:$0xff] %v1129
    // Predicated region
    $region26: #{tpu_custom_call.1} parent=1 // pred_check
      _
    $region27: #{tpu_custom_call.1} parent=1 // pred_check_branch
      %1140 = sbr.rel (0) target = $region29
    $region28: #{tpu_custom_call.1} parent=1 // pred_region
      %1142 = vsyncadd [#allocation5], 0
      %s1143 = sshll.u32 [#allocation9], 4
      %s1144 = int_to_ptr.vmem [resolvable:$true] %s1143
      %s1145 = sshll.u32 %s3, 4
      %s1146 = int_to_ptr.hbm [resolvable:$true] %s1145
      %1151 = dma.vmem_to_hbm [thread:$0]  %s1144, 1024, %s1146, [#allocation5], 128, 128, 8
    $region29: #{tpu_custom_call.1} parent=1 // pred_fallthru
      _
    // Predicated region
    $region30: #{tpu_custom_call.1} parent=1 // pred_check
      _
    $region31: #{tpu_custom_call.1} parent=1 // pred_check_branch
      %1153 = sbr.rel (0) target = $region33
    $region32: #{tpu_custom_call.1} parent=1 // pred_region
      %1155 = dma.done [#allocation5], 1024
    $region33: #{tpu_custom_call.1} parent=1 // pred_fallthru
      _
    %1156 = vsyncpa [#allocation4], 1
    %1157 = vsyncpa [#allocation7], 1
    %1158 = vsyncpa [#allocation5], 1

</llo_original>
